<compile_context>
chip_gen: v7x
topology: tpu7x:2x2x1
jax: 0.10.0
libtpu: 0.0.40
codegen_flags: <defaults>
</compile_context>

<pallas_src>
import functools
import math

import jax
import jax.numpy as jnp
from jax.experimental import pallas as pl
from jax.experimental.pallas import tpu as pltpu

LANE = 128      # lane width (last dim) of a vreg
SUBLANE = 8     # sublane count (second-to-last dim) of an f32 vreg


def _round_up(x, m):
    return ((x + m - 1) // m) * m


def _fused_gcn_kernel(a_ref, x_ref, w1_ref, b1_ref, w2_ref, b2_ref,
                      o_ref, hid_ref, acc_ref):
    """Grid = (phase, row tile i, contraction tile k)."""
    phase = pl.program_id(0)
    i = pl.program_id(1)
    k = pl.program_id(2)
    n_k = pl.num_programs(2)
    tm = acc_ref.shape[0]        # row-tile size
    tk = a_ref.shape[1]          # contraction-tile size

    # Zero the f32 accumulator at the start of every contraction (both phases).
    @pl.when(k == 0)
    def _init_acc():
        acc_ref[...] = jnp.zeros_like(acc_ref)

    # ---------------- phase 0: hidden = relu(A @ (X @ W1) + b1) -------------
    @pl.when(phase == 0)
    def _layer1():
        # Weight first: (tk, Cp) @ (Cp, Hp) is a tiny lane-dense matmul; the
        # lane-sparse [tm, C] AX intermediate is never formed.
        xw = jnp.dot(x_ref[...], w1_ref[...],
                     preferred_element_type=jnp.float32)
        acc_ref[...] += jnp.dot(a_ref[...], xw.astype(jnp.bfloat16),
                                preferred_element_type=jnp.float32)

        @pl.when(k == n_k - 1)
        def _finalize_hidden():
            # Bias + ReLU only once per row tile; hidden stays resident in VMEM.
            h = jnp.maximum(acc_ref[...] + b1_ref[...], 0.0)
            row = pl.multiple_of(i * tm, tm)
            hid_ref[pl.ds(row, tm), :] = h.astype(hid_ref.dtype)

    # ---------------- phase 1: out = (A @ hidden) @ W2 + b2 -----------------
    @pl.when(phase == 1)
    def _layer2():
        row = pl.multiple_of(k * tk, tk)
        h_blk = hid_ref[pl.ds(row, tk), :]                      # (tk, Hp) bf16
        acc_ref[...] += jnp.dot(a_ref[...], h_blk,
                                preferred_element_type=jnp.float32)

        @pl.when(k == n_k - 1)
        def _finalize_out():
            out = jnp.dot(acc_ref[...].astype(jnp.bfloat16), w2_ref[...],
                          preferred_element_type=jnp.float32) + b2_ref[...]
            o_ref[...] = out.astype(o_ref.dtype)


def gcn_forward(X, A, params, *, tile_n=128):
    """Fused 2-layer GCN forward: A @ relu(A @ X @ W1_T + b1) @ W2_T + b2."""
    N, C = X.shape
    H = params["W1_T"].shape[1]
    F_out = params["W2_T"].shape[1]

    # Padded sizes: nodes to the tile size, features to lane / sublane widths.
    Np = _round_up(N, tile_n)
    Cp = _round_up(C, SUBLANE)     # tiny contraction dim
    Hp = _round_up(H, LANE)        # lane-dense hidden
    Fp = _round_up(F_out, LANE)    # lane-dense output

    bf = jnp.bfloat16
    # Zero-padding is mathematically inert here: padded A rows/cols are zero,
    # padded feature columns of X/W/b are zero.
    A_p = jnp.zeros((Np, Np), bf).at[:N, :N].set(A.astype(bf))
    X_p = jnp.zeros((Np, Cp), bf).at[:N, :C].set(X.astype(bf))
    W1_p = jnp.zeros((Cp, Hp), bf).at[:C, :H].set(params["W1_T"].astype(bf))
    b1_p = jnp.zeros((1, Hp), jnp.float32).at[:, :H].set(params["b1"])
    W2_p = jnp.zeros((Hp, Fp), bf).at[:H, :F_out].set(params["W2_T"].astype(bf))
    b2_p = jnp.zeros((1, Fp), jnp.float32).at[:, :F_out].set(params["b2"])

    n_tiles = Np // tile_n

    out_p = pl.pallas_call(
        _fused_gcn_kernel,
        out_shape=jax.ShapeDtypeStruct((Np, Fp), jnp.float32),
        grid_spec=pltpu.PrefetchScalarGridSpec(
            num_scalar_prefetch=0,
            grid=(2, n_tiles, n_tiles),           # (phase, row tile, k tile)
            in_specs=[
                pl.BlockSpec((tile_n, tile_n), lambda p, i, k: (i, k)),  # A
                pl.BlockSpec((tile_n, Cp), lambda p, i, k: (k, 0)),      # X
                pl.BlockSpec((Cp, Hp), lambda p, i, k: (0, 0)),          # W1
                pl.BlockSpec((1, Hp), lambda p, i, k: (0, 0)),           # b1
                pl.BlockSpec((Hp, Fp), lambda p, i, k: (0, 0)),          # W2
                pl.BlockSpec((1, Fp), lambda p, i, k: (0, 0)),           # b2
            ],
            # During phase 0 the output block index is pinned to (0, 0) so no
            # unwritten buffer is ever flushed to HBM; phase 1 writes (i, 0).
            out_specs=pl.BlockSpec((tile_n, Fp), lambda p, i, k: (p * i, 0)),
            scratch_shapes=[
                pltpu.VMEM((Np, Hp), jnp.bfloat16),     # resident hidden
                pltpu.VMEM((tile_n, Hp), jnp.float32),  # f32 accumulator
            ],
        ),
        compiler_params=pltpu.CompilerParams(
            # Phase/row axes must stay sequential: phase-1 row tiles read
            # hidden rows written by every phase-0 row tile (per-core scratch).
            dimension_semantics=("arbitrary", "arbitrary", "arbitrary"),
            # Above the 16/32 MiB scoped defaults, below v7x's 64 MiB physical;
            # leaves headroom for larger tiles (tile_n=256-512) on big graphs.
            vmem_limit_bytes=48 * 1024 * 1024,
        ),
    )(A_p, X_p, W1_p, b1_p, W2_p, b2_p)

    return out_p[:N, :F_out]


# ----------------------------- parameter init -------------------------------
def _xavier_uniform(key, shape, gain):
    # shape = (out_features, in_features), matching torch's Linear.weight
    fan_out, fan_in = shape
    a = gain * math.sqrt(6.0 / (fan_in + fan_out))
    return jax.random.uniform(key, shape, jnp.float32, minval=-a, maxval=a)


def _linear_bias(key, in_features, out_features):
    # torch nn.Linear default bias init: U(-1/sqrt(fan_in), 1/sqrt(fan_in))
    bound = 1.0 / math.sqrt(in_features)
    return jax.random.uniform(
        key, (1, out_features), jnp.float32, minval=-bound, maxval=bound
    )


def init_gcn_params(key, C, F, H):
    k1, k2, k3, k4 = jax.random.split(key, 4)
    gain = 1.414
    W1 = _xavier_uniform(k1, (H, C), gain)   # torch layout (out, in)
    W2 = _xavier_uniform(k2, (F, H), gain)
    return {
        "W1_T": W1.T,                        # (C, H)
        "b1": _linear_bias(k3, C, H),        # (1, H)
        "W2_T": W2.T,                        # (H, F)
        "b2": _linear_bias(k4, H, F),        # (1, F)
    }


if __name__ == "__main__":
    key = jax.random.PRNGKey(0)
    kx, ka, kp = jax.random.split(key, 3)

    # Small-but-tiled shapes: N=300 nodes (padded to 384 = 3 x 128 in the
    # wrapper -> grid (2, 3, 3)), C=4 input features, H=32 hidden, F=8 output.
    N, C, H, Fout = 300, 4, 32, 8

    X = jax.random.normal(kx, (N, C), jnp.float32)
    # symmetric, row-normalized dense adjacency (deterministic)
    A_raw = (jax.random.uniform(ka, (N, N)) > 0.9).astype(jnp.float32)
    A = A_raw + A_raw.T + jnp.eye(N, dtype=jnp.float32)
    deg = jnp.sum(A, axis=1, keepdims=True)
    A = A / deg

    params = init_gcn_params(kp, C, Fout, H)

    out = jax.jit(gcn_forward)(X, A, params)
    jax.block_until_ready(out)

    # Reference in plain f32 JAX (inference semantics, dropout = identity).
    # The kernel runs bf16 MXU inputs with f32 accumulation, so compare with a
    # bf16-appropriate tolerance.
    h_ref = jnp.maximum(A @ X @ params["W1_T"] + params["b1"], 0.0)
    out_ref = A @ h_ref @ params["W2_T"] + params["b2"]

    assert out.shape == (N, Fout)
    assert jnp.allclose(out, out_ref, atol=3e-2, rtol=3e-2), float(
        jnp.max(jnp.abs(out - out_ref)))

    print("KERNEL_OK")
</pallas_src>

<mosaic_0001>
module attributes {stable_mosaic.version = 11 : i64} {
  func.func @_fused_gcn_kernel(%arg0: i32, %arg1: i32, %arg2: i32, %arg3: memref<128x128xbf16, #tpu.memory_space<vmem>>, %arg4: memref<128x8xbf16, #tpu.memory_space<vmem>>, %arg5: memref<8x128xbf16, #tpu.memory_space<vmem>>, %arg6: memref<1x128xf32, #tpu.memory_space<vmem>>, %arg7: memref<128x128xbf16, #tpu.memory_space<vmem>>, %arg8: memref<1x128xf32, #tpu.memory_space<vmem>>, %arg9: memref<128x128xf32, #tpu.memory_space<vmem>>, %arg10: memref<384x128xbf16, #tpu.memory_space<vmem>>, %arg11: memref<128x128xf32, #tpu.memory_space<vmem>>) attributes {dimension_semantics = [#tpu.dimension_semantics<arbitrary>, #tpu.dimension_semantics<arbitrary>, #tpu.dimension_semantics<arbitrary>], iteration_bounds = array<i64: 2, 3, 3>, scalar_prefetch = 0 : i64, scratch_operands = 2 : i64, tpu.core_type = #tpu.core_type<tc>, window_params = [{transform_indices = @transform_0, window_bounds = array<i64: 128, 128>}, {transform_indices = @transform_1, window_bounds = array<i64: 128, 8>}, {pipeline_mode = #tpu.pipeline_mode<synchronous>, transform_indices = @transform_2, window_bounds = array<i64: 8, 128>}, {pipeline_mode = #tpu.pipeline_mode<synchronous>, transform_indices = @transform_3, window_bounds = array<i64: 1, 128>}, {pipeline_mode = #tpu.pipeline_mode<synchronous>, transform_indices = @transform_4, window_bounds = array<i64: 128, 128>}, {pipeline_mode = #tpu.pipeline_mode<synchronous>, transform_indices = @transform_5, window_bounds = array<i64: 1, 128>}, {transform_indices = @transform_6, window_bounds = array<i64: 128, 128>}]} {
    %c0_i32 = arith.constant 0 : i32
    %0 = arith.cmpi eq, %arg2, %c0_i32 : i32
    %1 = arith.extui %0 : i1 to i32
    %c0_i32_0 = arith.constant 0 : i32
    %2 = arith.cmpi ne, %1, %c0_i32_0 : i32
    scf.if %2 {
      %cst = arith.constant 0.000000e+00 : f32
      %9 = vector.broadcast %cst : f32 to vector<128x128xf32>
      %c0 = arith.constant 0 : index
      %c0_4 = arith.constant 0 : index
      %10 = vector.load %arg11[%c0, %c0_4] : memref<128x128xf32, #tpu.memory_space<vmem>>, vector<128x128xf32>
      tpu.vector_store %arg11[%c0, %c0_4], %9 {strides = array<i32>} : memref<128x128xf32, #tpu.memory_space<vmem>>, vector<128x128xf32>,
    } else {
    }
    %c0_i32_1 = arith.constant 0 : i32
    %3 = arith.cmpi eq, %arg0, %c0_i32_1 : i32
    %4 = arith.extui %3 : i1 to i32
    %c0_i32_2 = arith.constant 0 : i32
    %5 = arith.cmpi ne, %4, %c0_i32_2 : i32
    scf.if %5 {
      %c0 = arith.constant 0 : index
      %c0_4 = arith.constant 0 : index
      %9 = vector.load %arg4[%c0, %c0_4] : memref<128x8xbf16, #tpu.memory_space<vmem>>, vector<128x8xbf16>
      %c0_5 = arith.constant 0 : index
      %c0_6 = arith.constant 0 : index
      %10 = vector.load %arg5[%c0_5, %c0_6] : memref<8x128xbf16, #tpu.memory_space<vmem>>, vector<8x128xbf16>
      %cst = arith.constant dense<0.000000e+00> : vector<128x128xf32>
      %11 = tpu.matmul %9, %10, %cst {dimension_numbers = #tpu.dot_dimension_numbers<[1], [0], [0], [1], [0, 0, 1, 1], [], []>} : vector<128x8xbf16>, vector<8x128xbf16>, vector<128x128xf32> -> vector<128x128xf32>
      %c0_7 = arith.constant 0 : index
      %c0_8 = arith.constant 0 : index
      %12 = vector.load %arg11[%c0_7, %c0_8] : memref<128x128xf32, #tpu.memory_space<vmem>>, vector<128x128xf32>
      %c0_9 = arith.constant 0 : index
      %c0_10 = arith.constant 0 : index
      %13 = vector.load %arg3[%c0_9, %c0_10] : memref<128x128xbf16, #tpu.memory_space<vmem>>, vector<128x128xbf16>
      %14 = arith.truncf %11 : vector<128x128xf32> to vector<128x128xbf16>
      %cst_11 = arith.constant dense<0.000000e+00> : vector<128x128xf32>
      %15 = tpu.matmul %13, %14, %cst_11 {dimension_numbers = #tpu.dot_dimension_numbers<[1], [0], [0], [1], [0, 0, 1, 1], [], []>} : vector<128x128xbf16>, vector<128x128xbf16>, vector<128x128xf32> -> vector<128x128xf32>
      %16 = arith.addf %12, %15 : vector<128x128xf32>
      %c0_12 = arith.constant 0 : index
      %c0_13 = arith.constant 0 : index
      %17 = vector.load %arg11[%c0_12, %c0_13] : memref<128x128xf32, #tpu.memory_space<vmem>>, vector<128x128xf32>
      tpu.vector_store %arg11[%c0_12, %c0_13], %16 {strides = array<i32>} : memref<128x128xf32, #tpu.memory_space<vmem>>, vector<128x128xf32>,
      %c2_i32 = arith.constant 2 : i32
      %18 = arith.cmpi eq, %arg2, %c2_i32 : i32
      %19 = arith.extui %18 : i1 to i32
      %c0_i32_14 = arith.constant 0 : i32
      %20 = arith.cmpi ne, %19, %c0_i32_14 : i32
      scf.if %20 {
        %c0_15 = arith.constant 0 : index
        %c0_16 = arith.constant 0 : index
        %21 = vector.load %arg11[%c0_15, %c0_16] : memref<128x128xf32, #tpu.memory_space<vmem>>, vector<128x128xf32>
        %c0_17 = arith.constant 0 : index
        %c0_18 = arith.constant 0 : index
        %22 = vector.load %arg6[%c0_17, %c0_18] : memref<1x128xf32, #tpu.memory_space<vmem>>, vector<1x128xf32>
        %23 = vector.broadcast %22 : vector<1x128xf32> to vector<128x128xf32>
        %24 = arith.addf %21, %23 : vector<128x128xf32>
        %cst_19 = arith.constant 0.000000e+00 : f32
        %25 = vector.broadcast %cst_19 : f32 to vector<128x128xf32>
        %26 = arith.maximumf %24, %25 : vector<128x128xf32>
        %c128_i32 = arith.constant 128 : i32
        %27 = arith.muli %arg1, %c128_i32 : i32
        %28 = tpu.assume_multiple %27, 128 : i32
        %29 = arith.truncf %26 : vector<128x128xf32> to vector<128x128xbf16>
        %30 = arith.index_cast %28 : i32 to index
        %c0_20 = arith.constant 0 : index
        %31 = vector.load %arg10[%30, %c0_20] : memref<384x128xbf16, #tpu.memory_space<vmem>>, vector<128x128xbf16>
        tpu.vector_store %arg10[%30, %c0_20], %29 {strides = array<i32>} : memref<384x128xbf16, #tpu.memory_space<vmem>>, vector<128x128xbf16>,
      } else {
      }
    } else {
    }
    %c1_i32 = arith.constant 1 : i32
    %6 = arith.cmpi eq, %arg0, %c1_i32 : i32
    %7 = arith.extui %6 : i1 to i32
    %c0_i32_3 = arith.constant 0 : i32
    %8 = arith.cmpi ne, %7, %c0_i32_3 : i32
    scf.if %8 {
      %c128_i32 = arith.constant 128 : i32
      %9 = arith.muli %arg2, %c128_i32 : i32
      %10 = tpu.assume_multiple %9, 128 : i32
      %11 = arith.index_cast %10 : i32 to index
      %c0 = arith.constant 0 : index
      %12 = vector.load %arg10[%11, %c0] : memref<384x128xbf16, #tpu.memory_space<vmem>>, vector<128x128xbf16>
      %c0_4 = arith.constant 0 : index
      %c0_5 = arith.constant 0 : index
      %13 = vector.load %arg11[%c0_4, %c0_5] : memref<128x128xf32, #tpu.memory_space<vmem>>, vector<128x128xf32>
      %c0_6 = arith.constant 0 : index
      %c0_7 = arith.constant 0 : index
      %14 = vector.load %arg3[%c0_6, %c0_7] : memref<128x128xbf16, #tpu.memory_space<vmem>>, vector<128x128xbf16>
      %cst = arith.constant dense<0.000000e+00> : vector<128x128xf32>
      %15 = tpu.matmul %14, %12, %cst {dimension_numbers = #tpu.dot_dimension_numbers<[1], [0], [0], [1], [0, 0, 1, 1], [], []>} : vector<128x128xbf16>, vector<128x128xbf16>, vector<128x128xf32> -> vector<128x128xf32>
      %16 = arith.addf %13, %15 : vector<128x128xf32>
      %c0_8 = arith.constant 0 : index
      %c0_9 = arith.constant 0 : index
      %17 = vector.load %arg11[%c0_8, %c0_9] : memref<128x128xf32, #tpu.memory_space<vmem>>, vector<128x128xf32>
      tpu.vector_store %arg11[%c0_8, %c0_9], %16 {strides = array<i32>} : memref<128x128xf32, #tpu.memory_space<vmem>>, vector<128x128xf32>,
      %c2_i32 = arith.constant 2 : i32
      %18 = arith.cmpi eq, %arg2, %c2_i32 : i32
      %19 = arith.extui %18 : i1 to i32
      %c0_i32_10 = arith.constant 0 : i32
      %20 = arith.cmpi ne, %19, %c0_i32_10 : i32
      scf.if %20 {
        %c0_11 = arith.constant 0 : index
        %c0_12 = arith.constant 0 : index
        %21 = vector.load %arg11[%c0_11, %c0_12] : memref<128x128xf32, #tpu.memory_space<vmem>>, vector<128x128xf32>
        %22 = arith.truncf %21 : vector<128x128xf32> to vector<128x128xbf16>
        %c0_13 = arith.constant 0 : index
        %c0_14 = arith.constant 0 : index
        %23 = vector.load %arg7[%c0_13, %c0_14] : memref<128x128xbf16, #tpu.memory_space<vmem>>, vector<128x128xbf16>
        %cst_15 = arith.constant dense<0.000000e+00> : vector<128x128xf32>
        %24 = tpu.matmul %22, %23, %cst_15 {dimension_numbers = #tpu.dot_dimension_numbers<[1], [0], [0], [1], [0, 0, 1, 1], [], []>} : vector<128x128xbf16>, vector<128x128xbf16>, vector<128x128xf32> -> vector<128x128xf32>
        %c0_16 = arith.constant 0 : index
        %c0_17 = arith.constant 0 : index
        %25 = vector.load %arg8[%c0_16, %c0_17] : memref<1x128xf32, #tpu.memory_space<vmem>>, vector<1x128xf32>
        %26 = vector.broadcast %25 : vector<1x128xf32> to vector<128x128xf32>
        %27 = arith.addf %24, %26 : vector<128x128xf32>
        %c0_18 = arith.constant 0 : index
        %c0_19 = arith.constant 0 : index
        %28 = vector.load %arg9[%c0_18, %c0_19] : memref<128x128xf32, #tpu.memory_space<vmem>>, vector<128x128xf32>
        tpu.vector_store %arg9[%c0_18, %c0_19], %27 {strides = array<i32>} : memref<128x128xf32, #tpu.memory_space<vmem>>, vector<128x128xf32>,
      } else {
      }
    } else {
    }
    return
  }
  func.func @transform_0(%arg0: i32, %arg1: i32, %arg2: i32) -> (i32, i32) {
    %c0_i32 = arith.constant 0 : i32
    return %arg1, %arg2 : i32, i32
  }
  func.func @transform_1(%arg0: i32, %arg1: i32, %arg2: i32) -> (i32, i32) {
    %c0_i32 = arith.constant 0 : i32
    %c0_i32_0 = arith.constant 0 : i32
    return %arg2, %c0_i32 : i32, i32
  }
  func.func @transform_2(%arg0: i32, %arg1: i32, %arg2: i32) -> (i32, i32) {
    %c0_i32 = arith.constant 0 : i32
    %c0_i32_0 = arith.constant 0 : i32
    %c0_i32_1 = arith.constant 0 : i32
    return %c0_i32, %c0_i32_0 : i32, i32
  }
  func.func @transform_3(%arg0: i32, %arg1: i32, %arg2: i32) -> (i32, i32) {
    %c0_i32 = arith.constant 0 : i32
    %c0_i32_0 = arith.constant 0 : i32
    %c0_i32_1 = arith.constant 0 : i32
    return %c0_i32, %c0_i32_0 : i32, i32
  }
  func.func @transform_4(%arg0: i32, %arg1: i32, %arg2: i32) -> (i32, i32) {
    %c0_i32 = arith.constant 0 : i32
    %c0_i32_0 = arith.constant 0 : i32
    %c0_i32_1 = arith.constant 0 : i32
    return %c0_i32, %c0_i32_0 : i32, i32
  }
  func.func @transform_5(%arg0: i32, %arg1: i32, %arg2: i32) -> (i32, i32) {
    %c0_i32 = arith.constant 0 : i32
    %c0_i32_0 = arith.constant 0 : i32
    %c0_i32_1 = arith.constant 0 : i32
    return %c0_i32, %c0_i32_0 : i32, i32
  }
  func.func @transform_6(%arg0: i32, %arg1: i32, %arg2: i32) -> (i32, i32) {
    %0 = arith.muli %arg0, %arg1 : i32
    %c0_i32 = arith.constant 0 : i32
    %c0_i32_0 = arith.constant 0 : i32
    return %0, %c0_i32 : i32, i32
  }
}

</mosaic_0001>

<llo_original>
// kernel: gcn_forward.1
$region0: #{gcn_forward.1}
  #allocation0 [shape = 'u32[]', space=smem, size = 0x4, offset = 0x4, fixed_abs, tag = 'smem constant byte address 0x4 - core index']
  #allocation1 [shape = 'u32[144,128]{1,0:T(1,128)}', space=vmem, size = 0x12000, scoped, tag = 'internal scratch']
  #allocation2 [shape = 'bf16[384,128]{1,0:T(16,128)(2,1)}', space=vmem, size = 0x18000, scoped, tag = 'scratch operand']
  #allocation3 [shape = 'f32[128,128]{1,0:T(8,128)}', space=vmem, size = 0x10000, scoped, tag = 'scratch operand']
  %s0 = inlined_call_operand.vmem [shape: bf16[384,384], index: 0, kind: input, shape index: {}]
  %s1 = inlined_call_operand.vmem [shape: bf16[384,8], index: 1, kind: input, shape index: {}]
  %s2 = inlined_call_operand.vmem [shape: bf16[8,128], index: 2, kind: input, shape index: {}]
  %s3 = inlined_call_operand.vmem [shape: f32[1,128], index: 3, kind: input, shape index: {}]
  %s4 = inlined_call_operand.vmem [shape: bf16[128,128], index: 4, kind: input, shape index: {}]
  %s5 = inlined_call_operand.vmem [shape: f32[1,128], index: 5, kind: input, shape index: {}]
  %s6 = inlined_call_operand.vmem [shape: f32[384,128], index: 6, kind: output, shape index: {}]
  %s7 = sld [smem:[#allocation0]]
  $region118: #{gcn_forward.1} parent=0
    _
  %s9 = ssub.s32 1, %s7
  %s10 = scalar_select 0, %s9, %s7
  $region1: #{gcn_forward.1} parent=0
    #allocation4 [shape = 'u8[65536]{0}', space=vmem, size = 0x10000, scoped, tag = 'input window, operand 0']
    loop: start=0, step=1, limit=20
    $region2: #{gcn_forward.1} parent=1 // loop_pre_header
      _
    $region3: #{gcn_forward.1} parent=1 // loop_header
      %s12 = sphi 0, %s16
      %p13 = scmp.ge.s32.totalorder %s12, 20
      %s19 = sphi 0, %s38
      %s20 = sphi 0, %s34
      %s21 = sphi 0, %s30
      %s22 = sphi 0, %s19
      %s23 = sphi 0, %s20
      %s24 = sphi 0, %s21
      %s25 = sphi 0, %s22
      %s26 = sphi 0, %s23
      %s27 = sphi 0, %s24
      %s43 = sphi 0, %s45
      %s46 = sphi 0, %s43
      %s47 = sphi 0, %s46
      %s63 = sphi 0, %s47
      %s69 = sphi 0, %s71
      %s72 = sphi 0, %s69
      %s73 = sphi 0, %s72
      %s89 = sphi 0, %s73
      %s93 = sphi 0, %s93
      %s95 = sphi 0, %s93
      %s96 = sphi 0, %s95
      %s110 = sphi 0, %s96
      %s114 = sphi 0, %s114
      %s116 = sphi 0, %s114
      %s117 = sphi 0, %s116
      %s131 = sphi 0, %s117
      %s135 = sphi 0, %s135
      %s137 = sphi 0, %s135
      %s138 = sphi 0, %s137
      %s152 = sphi 0, %s138
      %s156 = sphi 0, %s156
      %s158 = sphi 0, %s156
      %s159 = sphi 0, %s158
      %s173 = sphi 0, %s159
      %s181 = sphi 0, %s183
      %s184 = sphi 0, %s181
      %s185 = sphi 0, %s184
      %s201 = sphi 0, %s185
    $region4: #{gcn_forward.1} parent=1 // loop_header_branch
      %15 = sbr.rel (%p13) target = $region8
    $region5: #{gcn_forward.1} parent=1 // loop_body
      %s17 = ssub.s32 %s12, 1
      %s18 = ssub.s32 %s12, 2
      %s28 = sadd.s32 1, %s21
      %p29 = scmp.ge.s32.totalorder %s28, 3
      %s30 = scalar_select %p29, 0, %s28
      %s31 = sadd.s32 1, %s20
      %s32 = scalar_select %p29, %s31, %s20
      %p33 = scmp.ge.s32.totalorder %s32, 3
      %s34 = scalar_select %p33, 0, %s32
      %s35 = sadd.s32 1, %s19
      %s36 = scalar_select %p33, %s35, %s19
      %p37 = scmp.ge.s32.totalorder %s36, 2
      %s38 = scalar_select %p37, 0, %s36
      %s39 = ssub.s32 %s20, %s34
      %s40 = ssub.s32 %s21, %s30
      %s41 = sor.u32 %s39, %s40
      %p42 = scmp.eq.s32.totalorder %s41, 0
      %s44 = sadd.s32 %s43, 1
      %s45 = scalar_select %p42, %s43, %s44
      %p48 = pneg %p42
      %p49 = scmp.eq.s32.totalorder %s12, 17
      %p50 = por %p48, %p49
      %p51 = scmp.ne.s32.totalorder %s43, %s46
      %p52 = scmp.eq.s32.totalorder %s12, 0
      %p53 = por %p51, %p52
      %p54 = scmp.ne.s32.totalorder %s43, %s46
      %p55 = scmp.eq.s32.totalorder %s17, 17
      %p56 = por %p54, %p55
      %p57 = scmp.ne.s32.totalorder %s46, %s47
      %p58 = scmp.eq.s32.totalorder %s17, 0
      %p59 = por %p57, %p58
      %p60 = scmp.ne.s32.totalorder %s46, %s47
      %p61 = scmp.eq.s32.totalorder %s18, 17
      %p62 = por %p60, %p61
      %p64 = scmp.ne.s32.totalorder %s47, %s63
      %p65 = scmp.eq.s32.totalorder %s18, 0
      %p66 = por %p64, %p65
      %s67 = ssub.s32 %s21, %s30
      %p68 = scmp.eq.s32.totalorder %s67, 0
      %s70 = sadd.s32 %s69, 1
      %s71 = scalar_select %p68, %s69, %s70
      %p74 = pneg %p68
      %p75 = scmp.eq.s32.totalorder %s12, 17
      %p76 = por %p74, %p75
      %p77 = scmp.ne.s32.totalorder %s69, %s72
      %p78 = scmp.eq.s32.totalorder %s12, 0
      %p79 = por %p77, %p78
      %p80 = scmp.ne.s32.totalorder %s69, %s72
      %p81 = scmp.eq.s32.totalorder %s17, 17
      %p82 = por %p80, %p81
      %p83 = scmp.ne.s32.totalorder %s72, %s73
      %p84 = scmp.eq.s32.totalorder %s17, 0
      %p85 = por %p83, %p84
      %p86 = scmp.ne.s32.totalorder %s72, %s73
      %p87 = scmp.eq.s32.totalorder %s18, 17
      %p88 = por %p86, %p87
      %p90 = scmp.ne.s32.totalorder %s73, %s89
      %p91 = scmp.eq.s32.totalorder %s18, 0
      %p92 = por %p90, %p91
      %s94 = sadd.s32 %s93, 1
      %p97 = scmp.eq.s32.totalorder %s12, 17
      %p98 = scmp.ne.s32.totalorder %s93, %s95
      %p99 = scmp.eq.s32.totalorder %s12, 0
      %p100 = por %p98, %p99
      %p101 = scmp.ne.s32.totalorder %s93, %s95
      %p102 = scmp.eq.s32.totalorder %s17, 17
      %p103 = por %p101, %p102
      %p104 = scmp.ne.s32.totalorder %s95, %s96
      %p105 = scmp.eq.s32.totalorder %s17, 0
      %p106 = por %p104, %p105
      %p107 = scmp.ne.s32.totalorder %s95, %s96
      %p108 = scmp.eq.s32.totalorder %s18, 17
      %p109 = por %p107, %p108
      %p111 = scmp.ne.s32.totalorder %s96, %s110
      %p112 = scmp.eq.s32.totalorder %s18, 0
      %p113 = por %p111, %p112
      %s115 = sadd.s32 %s114, 1
      %p118 = scmp.eq.s32.totalorder %s12, 17
      %p119 = scmp.ne.s32.totalorder %s114, %s116
      %p120 = scmp.eq.s32.totalorder %s12, 0
      %p121 = por %p119, %p120
      %p122 = scmp.ne.s32.totalorder %s114, %s116
      %p123 = scmp.eq.s32.totalorder %s17, 17
      %p124 = por %p122, %p123
      %p125 = scmp.ne.s32.totalorder %s116, %s117
      %p126 = scmp.eq.s32.totalorder %s17, 0
      %p127 = por %p125, %p126
      %p128 = scmp.ne.s32.totalorder %s116, %s117
      %p129 = scmp.eq.s32.totalorder %s18, 17
      %p130 = por %p128, %p129
      %p132 = scmp.ne.s32.totalorder %s117, %s131
      %p133 = scmp.eq.s32.totalorder %s18, 0
      %p134 = por %p132, %p133
      %s136 = sadd.s32 %s135, 1
      %p139 = scmp.eq.s32.totalorder %s12, 17
      %p140 = scmp.ne.s32.totalorder %s135, %s137
      %p141 = scmp.eq.s32.totalorder %s12, 0
      %p142 = por %p140, %p141
      %p143 = scmp.ne.s32.totalorder %s135, %s137
      %p144 = scmp.eq.s32.totalorder %s17, 17
      %p145 = por %p143, %p144
      %p146 = scmp.ne.s32.totalorder %s137, %s138
      %p147 = scmp.eq.s32.totalorder %s17, 0
      %p148 = por %p146, %p147
      %p149 = scmp.ne.s32.totalorder %s137, %s138
      %p150 = scmp.eq.s32.totalorder %s18, 17
      %p151 = por %p149, %p150
      %p153 = scmp.ne.s32.totalorder %s138, %s152
      %p154 = scmp.eq.s32.totalorder %s18, 0
      %p155 = por %p153, %p154
      %s157 = sadd.s32 %s156, 1
      %p160 = scmp.eq.s32.totalorder %s12, 17
      %p161 = scmp.ne.s32.totalorder %s156, %s158
      %p162 = scmp.eq.s32.totalorder %s12, 0
      %p163 = por %p161, %p162
      %p164 = scmp.ne.s32.totalorder %s156, %s158
      %p165 = scmp.eq.s32.totalorder %s17, 17
      %p166 = por %p164, %p165
      %p167 = scmp.ne.s32.totalorder %s158, %s159
      %p168 = scmp.eq.s32.totalorder %s17, 0
      %p169 = por %p167, %p168
      %p170 = scmp.ne.s32.totalorder %s158, %s159
      %p171 = scmp.eq.s32.totalorder %s18, 17
      %p172 = por %p170, %p171
      %p174 = scmp.ne.s32.totalorder %s159, %s173
      %p175 = scmp.eq.s32.totalorder %s18, 0
      %p176 = por %p174, %p175
      %s177 = smul.u32 %s19, %s20
      %s178 = smul.u32 %s38, %s34
      %s179 = ssub.s32 %s177, %s178
      %p180 = scmp.eq.s32.totalorder %s179, 0
      %s182 = sadd.s32 %s181, 1
      %s183 = scalar_select %p180, %s181, %s182
      %p186 = pneg %p180
      %p187 = scmp.eq.s32.totalorder %s12, 17
      %p188 = por %p186, %p187
      %p189 = scmp.ne.s32.totalorder %s181, %s184
      %p190 = scmp.eq.s32.totalorder %s12, 0
      %p191 = por %p189, %p190
      %p192 = scmp.ne.s32.totalorder %s181, %s184
      %p193 = scmp.eq.s32.totalorder %s17, 17
      %p194 = por %p192, %p193
      %p195 = scmp.ne.s32.totalorder %s184, %s185
      %p196 = scmp.eq.s32.totalorder %s17, 0
      %p197 = por %p195, %p196
      %p198 = scmp.ne.s32.totalorder %s184, %s185
      %p199 = scmp.eq.s32.totalorder %s18, 17
      %p200 = por %p198, %p199
      %p202 = scmp.ne.s32.totalorder %s185, %s201
      %p203 = scmp.eq.s32.totalorder %s18, 0
      %p204 = por %p202, %p203
      %p205 = scmp.le.s32.totalorder 1, %s12
      %p206 = scmp.lt.s32.totalorder %s12, 19
      %p207 = pnand %p205, %p206
      %p208 = pneg %p207
      // Predicated region
      $region9: #{gcn_forward.1} parent=5 // pred_check
        _
      $region10: #{gcn_forward.1} parent=5 // pred_check_branch
        %210 = sbr.rel (%p207) target = $region12
      $region11: #{gcn_forward.1} parent=5 // pred_region
        %s211 = ssub.s32 %s12, 1
        // Predicated region
        $region13: #{gcn_forward.1} parent=11 // pred_check
          %p212 = pneg %p106
        $region14: #{gcn_forward.1} parent=11 // pred_check_branch
          %214 = sbr.rel (%p212) target = $region16
        $region15: #{gcn_forward.1} parent=11 // pred_region
          _
        $region16: #{gcn_forward.1} parent=11 // pred_fallthru
          _
        // Predicated region
        $region17: #{gcn_forward.1} parent=11 // pred_check
          %p215 = pneg %p127
        $region18: #{gcn_forward.1} parent=11 // pred_check_branch
          %217 = sbr.rel (%p215) target = $region20
        $region19: #{gcn_forward.1} parent=11 // pred_region
          _
        $region20: #{gcn_forward.1} parent=11 // pred_fallthru
          _
        // Predicated region
        $region21: #{gcn_forward.1} parent=11 // pred_check
          %p218 = pneg %p148
        $region22: #{gcn_forward.1} parent=11 // pred_check_branch
          %220 = sbr.rel (%p218) target = $region24
        $region23: #{gcn_forward.1} parent=11 // pred_region
          _
        $region24: #{gcn_forward.1} parent=11 // pred_fallthru
          _
        // Predicated region
        $region25: #{gcn_forward.1} parent=11 // pred_check
          %p221 = pneg %p169
        $region26: #{gcn_forward.1} parent=11 // pred_check_branch
          %223 = sbr.rel (%p221) target = $region28
        $region27: #{gcn_forward.1} parent=11 // pred_region
          _
        $region28: #{gcn_forward.1} parent=11 // pred_fallthru
          _
      $region12: #{gcn_forward.1} parent=5 // pred_fallthru
        _
      %p224 = scmp.lt.s32.totalorder %s12, 18
      // Predicated region
      $region29: #{gcn_forward.1} parent=5 // pred_check
        %p225 = pneg %p224
      $region30: #{gcn_forward.1} parent=5 // pred_check_branch
        %227 = sbr.rel (%p225) target = $region32
      $region31: #{gcn_forward.1} parent=5 // pred_region
        // Predicated region
        $region33: #{gcn_forward.1} parent=31 // pred_check
          %p228 = pneg %p53
        $region34: #{gcn_forward.1} parent=31 // pred_check_branch
          %230 = sbr.rel (%p228) target = $region36
        $region35: #{gcn_forward.1} parent=31 // pred_region
          %s231 = sand.u32 %s43, 1
          %s232 = sand.u32 %s43, 1
          %s233 = smul.addr %s232, 64
          %s234 = scalar_lea.vmem [#allocation4], %s233
          %s235 = smul.u32 16, %s20
          %s236 = smul.addr %s235, 3
          %s237 = sadd.s32 %s21, %s236
          %s238 = smul.addr %s237, 4
          %s239 = scalar_lea.vmem %s0, %s238
          // Predicated region
          $region37: #{gcn_forward.1} parent=35 // pred_check
            _
          $region38: #{gcn_forward.1} parent=35 // pred_check_branch
            %241 = sbr.rel (0) target = $region40
          $region39: #{gcn_forward.1} parent=35 // pred_region
            // Predicated region
            $region41: #{gcn_forward.1} parent=39 // pred_check
              _
            $region42: #{gcn_forward.1} parent=39 // pred_check_branch
              %243 = sbr.rel target = $region44
            $region43: #{gcn_forward.1} parent=39 // pred_region
              // Predicated region
              $region56: #{gcn_forward.1} parent=43 // pred_check
                _
              $region57: #{gcn_forward.1} parent=43 // pred_check_branch
                %288 = sbr.rel (0) target = $region59
              $region58: #{gcn_forward.1} parent=43 // pred_region
                loop: start=0, step=1, limit=1
                $region60: #{gcn_forward.1} parent=58 // loop_pre_header
                  _
                $region61: #{gcn_forward.1} parent=58 // loop_header
                  %s290 = sphi 0, %s294
                  %p291 = scmp.ge.s32.totalorder %s290, 1
                  %s295 = sphi %s239, %s239
                  %s296 = sphi %s234, %s234
                $region62: #{gcn_forward.1} parent=58 // loop_header_branch
                  %293 = sbr.rel (%p291) target = $region66
                $region63: #{gcn_forward.1} parent=58 // loop_body
                  _
                $region64: #{gcn_forward.1} parent=58 // loop_footer
                  %s294 = sadd.s32 1, %s290
                $region65: #{gcn_forward.1} parent=58 // loop_footer_branch
                  %289 = sbr.rel target = $region61
                $region66: #{gcn_forward.1} parent=58 // loop_exit
                  _
                loop: start=0, step=1, limit=1
                $region67: #{gcn_forward.1} parent=58 // loop_pre_header
                  _
                $region68: #{gcn_forward.1} parent=58 // loop_header
                  %s299 = sphi 0, %s303
                  %p300 = scmp.ge.s32.totalorder %s299, 1
                  %s304 = sphi %s239, %s239
                  %s305 = sphi %s234, %s234
                $region69: #{gcn_forward.1} parent=58 // loop_header_branch
                  %302 = sbr.rel (%p300) target = $region73
                $region70: #{gcn_forward.1} parent=58 // loop_body
                  %v306 = vld [vmem:[%s304] sm:$0xf]
                  %307 = vst [vmem:[%s305] sm:$0xf] %v306
                  %v308 = vld [vmem:[%s304 + $0xc] sm:$0xf]
                  %309 = vst [vmem:[%s305 + $0x4] sm:$0xf] %v308
                  %v310 = vld [vmem:[%s304 + $0x18] sm:$0xf]
                  %311 = vst [vmem:[%s305 + $0x8] sm:$0xf] %v310
                  %v312 = vld [vmem:[%s304 + $0x24] sm:$0xf]
                  %313 = vst [vmem:[%s305 + $0xc] sm:$0xf] %v312
                  %v314 = vld [vmem:[%s304 + $0x30] sm:$0xf]
                  %315 = vst [vmem:[%s305 + $0x10] sm:$0xf] %v314
                  %v316 = vld [vmem:[%s304 + $0x3c] sm:$0xf]
                  %317 = vst [vmem:[%s305 + $0x14] sm:$0xf] %v316
                  %v318 = vld [vmem:[%s304 + $0x48] sm:$0xf]
                  %319 = vst [vmem:[%s305 + $0x18] sm:$0xf] %v318
                  %v320 = vld [vmem:[%s304 + $0x54] sm:$0xf]
                  %321 = vst [vmem:[%s305 + $0x1c] sm:$0xf] %v320
                  %v322 = vld [vmem:[%s304 + $0x60] sm:$0xf]
                  %323 = vst [vmem:[%s305 + $0x20] sm:$0xf] %v322
                  %v324 = vld [vmem:[%s304 + $0x6c] sm:$0xf]
                  %325 = vst [vmem:[%s305 + $0x24] sm:$0xf] %v324
                  %v326 = vld [vmem:[%s304 + $0x78] sm:$0xf]
                  %327 = vst [vmem:[%s305 + $0x28] sm:$0xf] %v326
                  %v328 = vld [vmem:[%s304 + $0x84] sm:$0xf]
                  %329 = vst [vmem:[%s305 + $0x2c] sm:$0xf] %v328
                  %v330 = vld [vmem:[%s304 + $0x90] sm:$0xf]
                  %331 = vst [vmem:[%s305 + $0x30] sm:$0xf] %v330
                  %v332 = vld [vmem:[%s304 + $0x9c] sm:$0xf]
                  %333 = vst [vmem:[%s305 + $0x34] sm:$0xf] %v332
                  %v334 = vld [vmem:[%s304 + $0xa8] sm:$0xf]
                  %335 = vst [vmem:[%s305 + $0x38] sm:$0xf] %v334
                  %v336 = vld [vmem:[%s304 + $0xb4] sm:$0xf]
                  %337 = vst [vmem:[%s305 + $0x3c] sm:$0xf] %v336
                $region71: #{gcn_forward.1} parent=58 // loop_footer
                  %s303 = sadd.s32 1, %s299
                $region72: #{gcn_forward.1} parent=58 // loop_footer_branch
                  %298 = sbr.rel target = $region68
                $region73: #{gcn_forward.1} parent=58 // loop_exit
                  _
              $region59: #{gcn_forward.1} parent=43 // pred_fallthru
                _
            $region44: #{gcn_forward.1} parent=39 // pred_fallthru
              _
            // Predicated region
            $region45: #{gcn_forward.1} parent=39 // pred_check
              _
            $region46: #{gcn_forward.1} parent=39 // pred_check_branch
              %245 = sbr.rel (0) target = $region48
            $region47: #{gcn_forward.1} parent=39 // pred_region
              loop: start=0, step=1, limit=1
              $region49: #{gcn_forward.1} parent=47 // loop_pre_header
                _
              $region50: #{gcn_forward.1} parent=47 // loop_header
                %s248 = sphi 0, %s252
                %p249 = scmp.ge.s32.totalorder %s248, 1
                %s253 = sphi %s239, %s239
                %s254 = sphi %s234, %s234
              $region51: #{gcn_forward.1} parent=47 // loop_header_branch
                %251 = sbr.rel (%p249) target = $region55
              $region52: #{gcn_forward.1} parent=47 // loop_body
                %v255 = vld [vmem:[%s253] sm:$0xf]
                %256 = vst [vmem:[%s254] sm:$0xf] %v255
                %v257 = vld [vmem:[%s253 + $0xc] sm:$0xf]
                %258 = vst [vmem:[%s254 + $0x4] sm:$0xf] %v257
                %v259 = vld [vmem:[%s253 + $0x18] sm:$0xf]
                %260 = vst [vmem:[%s254 + $0x8] sm:$0xf] %v259
                %v261 = vld [vmem:[%s253 + $0x24] sm:$0xf]
                %262 = vst [vmem:[%s254 + $0xc] sm:$0xf] %v261
                %v263 = vld [vmem:[%s253 + $0x30] sm:$0xf]
                %264 = vst [vmem:[%s254 + $0x10] sm:$0xf] %v263
                %v265 = vld [vmem:[%s253 + $0x3c] sm:$0xf]
                %266 = vst [vmem:[%s254 + $0x14] sm:$0xf] %v265
                %v267 = vld [vmem:[%s253 + $0x48] sm:$0xf]
                %268 = vst [vmem:[%s254 + $0x18] sm:$0xf] %v267
                %v269 = vld [vmem:[%s253 + $0x54] sm:$0xf]
                %270 = vst [vmem:[%s254 + $0x1c] sm:$0xf] %v269
                %v271 = vld [vmem:[%s253 + $0x60] sm:$0xf]
                %272 = vst [vmem:[%s254 + $0x20] sm:$0xf] %v271
                %v273 = vld [vmem:[%s253 + $0x6c] sm:$0xf]
                %274 = vst [vmem:[%s254 + $0x24] sm:$0xf] %v273
                %v275 = vld [vmem:[%s253 + $0x78] sm:$0xf]
                %276 = vst [vmem:[%s254 + $0x28] sm:$0xf] %v275
                %v277 = vld [vmem:[%s253 + $0x84] sm:$0xf]
                %278 = vst [vmem:[%s254 + $0x2c] sm:$0xf] %v277
                %v279 = vld [vmem:[%s253 + $0x90] sm:$0xf]
                %280 = vst [vmem:[%s254 + $0x30] sm:$0xf] %v279
                %v281 = vld [vmem:[%s253 + $0x9c] sm:$0xf]
                %282 = vst [vmem:[%s254 + $0x34] sm:$0xf] %v281
                %v283 = vld [vmem:[%s253 + $0xa8] sm:$0xf]
                %284 = vst [vmem:[%s254 + $0x38] sm:$0xf] %v283
                %v285 = vld [vmem:[%s253 + $0xb4] sm:$0xf]
                %286 = vst [vmem:[%s254 + $0x3c] sm:$0xf] %v285
              $region53: #{gcn_forward.1} parent=47 // loop_footer
                %s252 = sadd.s32 1, %s248
              $region54: #{gcn_forward.1} parent=47 // loop_footer_branch
                %247 = sbr.rel target = $region50
              $region55: #{gcn_forward.1} parent=47 // loop_exit
                _
            $region48: #{gcn_forward.1} parent=39 // pred_fallthru
              _
          $region40: #{gcn_forward.1} parent=35 // pred_fallthru
            _
          %338 = vnop
        $region36: #{gcn_forward.1} parent=31 // pred_fallthru
          _
        // Predicated region
        $region74: #{gcn_forward.1} parent=31 // pred_check
          %p339 = pneg %p79
        $region75: #{gcn_forward.1} parent=31 // pred_check_branch
          %341 = sbr.rel (%p339) target = $region77
        $region76: #{gcn_forward.1} parent=31 // pred_region
          %s342 = smul.u32 16, %s21
          %p343 = scmp.lt.s32.totalorder %s342, 47
          %s344 = scalar_select %p343, %s342, 47
          %s345 = smul.addr %s344, 4
          %s346 = scalar_lea.vmem %s1, %s345
          %s347 = smul.u32 16, %s21
        $region77: #{gcn_forward.1} parent=31 // pred_fallthru
          _
      $region32: #{gcn_forward.1} parent=5 // pred_fallthru
        _
      %p348 = scmp.le.s32.totalorder 1, %s12
      %p349 = scmp.lt.s32.totalorder %s12, 19
      %p350 = pnand %p348, %p349
      %p351 = pneg %p350
      // Predicated region
      $region78: #{gcn_forward.1} parent=5 // pred_check
        _
      $region79: #{gcn_forward.1} parent=5 // pred_check_branch
        %353 = sbr.rel (%p350) target = $region81
      $region80: #{gcn_forward.1} parent=5 // pred_region
        %s354 = ssub.s32 %s12, 1
        %s355 = sand.u32 %s46, 1
        %s356 = sand.u32 %s46, 1
        %s357 = smul.addr %s356, 64
        %s358 = scalar_lea.vmem [#allocation4], %s357
        // Predicated region
        $region82: #{gcn_forward.1} parent=80 // pred_check
          %p359 = pneg %p59
        $region83: #{gcn_forward.1} parent=80 // pred_check_branch
          %361 = sbr.rel (%p359) target = $region85
        $region84: #{gcn_forward.1} parent=80 // pred_region
          _
        $region85: #{gcn_forward.1} parent=80 // pred_fallthru
          _
        %s362 = sand.u32 %s46, 1
        %s363 = sand.u32 %s46, 1
        %s364 = smul.addr %s363, 64
        %s365 = scalar_lea.vmem [#allocation4], %s364
        %p366 = pneg %p59
        %p367 = pneg %p56
        %s368 = smul.u32 16, %s24
        %p369 = scmp.lt.s32.totalorder %s368, 47
        %s370 = scalar_select %p369, %s368, 47
        %s371 = smul.addr %s370, 4
        %s372 = scalar_lea.vmem %s1, %s371
        %p373 = pneg %p85
        %p374 = pneg %p82
        %p375 = pneg %p106
        %p376 = pneg %p103
        %p377 = pneg %p127
        %p378 = pneg %p124
        %p379 = pneg %p148
        %p380 = pneg %p145
        %p381 = pneg %p169
        %p382 = pneg %p166
        %p383 = pneg %p197
        %p384 = pneg %p194
        %s385 = smul.u32 %s22, %s23
        %s386 = smul.u32 16, %s385
        %p387 = scmp.lt.s32.totalorder %s386, 47
        %s388 = scalar_select %p387, %s386, 47
        %s389 = smul.addr %s388, 8
        %s390 = scalar_lea.vmem %s6, %s389
        %s391 = smul.u32 16, %s23
        %s392 = smul.u32 16, %s24
        %p393 = scmp.lt.s32.totalorder %s392, 47
        %s394 = scalar_select %p393, %s392, 47
        %s395 = smul.addr %s394, 4
        %s396 = scalar_lea.vmem %s1, %s395
        %s397 = smul.u32 16, %s24
        %s398 = smul.u32 %s22, %s23
        %s399 = smul.u32 16, %s398
        %p400 = scmp.lt.s32.totalorder %s399, 47
        %s401 = scalar_select %p400, %s399, 47
        %s402 = smul.addr %s401, 8
        %s403 = scalar_lea.vmem %s6, %s402
        %s404 = smul.u32 %s22, %s23
        %s405 = smul.u32 16, %s404
        %p407 = scmp.eq.s32.totalorder %s24, 0
        // Predicated region
        $region86: #{gcn_forward.1} parent=80 // pred_check
          %p408 = pneg %p407
        $region87: #{gcn_forward.1} parent=80 // pred_check_branch
          %410 = sbr.rel (%p408) target = $region89
        $region88: #{gcn_forward.1} parent=80 // pred_region
          %411 = vst [vmem:[#allocation3] sm:$0xff] 0.0
          %412 = vst [vmem:[#allocation3 + $0x8] sm:$0xff] 0.0
          %413 = vst [vmem:[#allocation3 + $0x10] sm:$0xff] 0.0
          %414 = vst [vmem:[#allocation3 + $0x18] sm:$0xff] 0.0
          %415 = vst [vmem:[#allocation3 + $0x20] sm:$0xff] 0.0
          %416 = vst [vmem:[#allocation3 + $0x28] sm:$0xff] 0.0
          %417 = vst [vmem:[#allocation3 + $0x30] sm:$0xff] 0.0
          %418 = vst [vmem:[#allocation3 + $0x38] sm:$0xff] 0.0
          %419 = vst [vmem:[#allocation3 + $0x40] sm:$0xff] 0.0
          %420 = vst [vmem:[#allocation3 + $0x48] sm:$0xff] 0.0
          %421 = vst [vmem:[#allocation3 + $0x50] sm:$0xff] 0.0
          %422 = vst [vmem:[#allocation3 + $0x58] sm:$0xff] 0.0
          %423 = vst [vmem:[#allocation3 + $0x60] sm:$0xff] 0.0
          %424 = vst [vmem:[#allocation3 + $0x68] sm:$0xff] 0.0
          %425 = vst [vmem:[#allocation3 + $0x70] sm:$0xff] 0.0
          %426 = vst [vmem:[#allocation3 + $0x78] sm:$0xff] 0.0
        $region89: #{gcn_forward.1} parent=80 // pred_fallthru
          _
        %p427 = scmp.eq.s32.totalorder %s22, 0
        // Predicated region
        $region90: #{gcn_forward.1} parent=80 // pred_check
          %p428 = pneg %p427
        $region91: #{gcn_forward.1} parent=80 // pred_check_branch
          %430 = sbr.rel (%p428) target = $region93
        $region92: #{gcn_forward.1} parent=80 // pred_region
          %v431 = vld [vmem:[%s396] sm:$0xf]
          %v432 = vld [vmem:[%s396 + $0x4] sm:$0xf]
          %v433 = vld [vmem:[%s396 + $0x8] sm:$0xf]
          %v434 = vld [vmem:[%s396 + $0xc] sm:$0xf]
          %v435 = vld [vmem:[%s396 + $0x10] sm:$0xf]
          %v436 = vld [vmem:[%s396 + $0x14] sm:$0xf]
          %v437 = vld [vmem:[%s396 + $0x18] sm:$0xf]
          %v438 = vld [vmem:[%s396 + $0x1c] sm:$0xf]
          %v439 = vld [vmem:[%s396 + $0x20] sm:$0xf]
          %v440 = vld [vmem:[%s396 + $0x24] sm:$0xf]
          %v441 = vld [vmem:[%s396 + $0x28] sm:$0xf]
          %v442 = vld [vmem:[%s396 + $0x2c] sm:$0xf]
          %v443 = vld [vmem:[%s396 + $0x30] sm:$0xf]
          %v444 = vld [vmem:[%s396 + $0x34] sm:$0xf]
          %v445 = vld [vmem:[%s396 + $0x38] sm:$0xf]
          %v446 = vld [vmem:[%s396 + $0x3c] sm:$0xf]
          %v447 = vld [vmem:[%s2] sm:$0xf]
          %v464 = vunpack.c.l.b16 %v431
          %v465 = vunpack.c.l.b16 %v432
          %v466 = vunpack.c.l.b16 %v433
          %v467 = vunpack.c.l.b16 %v434
          %v468 = vunpack.c.l.b16 %v435
          %v469 = vunpack.c.l.b16 %v436
          %v470 = vunpack.c.l.b16 %v437
          %v471 = vunpack.c.l.b16 %v438
          %v472 = vunpack.c.l.b16 %v439
          %v473 = vunpack.c.l.b16 %v440
          %v474 = vunpack.c.l.b16 %v441
          %v475 = vunpack.c.l.b16 %v442
          %v476 = vunpack.c.l.b16 %v443
          %v477 = vunpack.c.l.b16 %v444
          %v478 = vunpack.c.l.b16 %v445
          %v479 = vunpack.c.l.b16 %v446
          %v480 = vpack.c.b16 %v465, %v464
          %v481 = vpack.c.b16 %v467, %v466
          %v482 = vpack.c.b16 %v469, %v468
          %v483 = vpack.c.b16 %v471, %v470
          %v484 = vpack.c.b16 %v473, %v472
          %v485 = vpack.c.b16 %v475, %v474
          %v486 = vpack.c.b16 %v477, %v476
          %v487 = vpack.c.b16 %v479, %v478
          %vm488 = vcmask 64512
          %v490 = vsel %vm488, %v480, 0
          %v493 = vsel %vm488, %v481, 0
          %v496 = vsel %vm488, %v482, 0
          %v499 = vsel %vm488, %v483, 0
          %v502 = vsel %vm488, %v484, 0
          %v505 = vsel %vm488, %v485, 0
          %v508 = vsel %vm488, %v486, 0
          %v511 = vsel %vm488, %v487, 0
          %vm513 = vcmask 1043456
          %v515 = vsel %vm513, %v447, 0
          %517 = vmatprep.subr.bf16.mxu0 0
          %518 = vmatpush1.bf16.msra.mxu0 %v515
          %519 = vmatprep.subr.bf16.mxu0 0
          %520 = vmatpush1.bf16.msra.mxu0 0
          %521 = vmatprep.subr.bf16.mxu0 0
          %522 = vmatpush1.bf16.msra.mxu0 0
          %523 = vmatprep.subr.bf16.mxu0 0
          %524 = vmatpush1.bf16.msra.mxu0 0
          %525 = vmatprep.subr.bf16.mxu0 0
          %526 = vmatpush1.bf16.msra.mxu0 0
          %527 = vmatprep.subr.bf16.mxu0 0
          %528 = vmatpush1.bf16.msra.mxu0 0
          %529 = vmatprep.subr.bf16.mxu0 0
          %530 = vmatpush1.bf16.msra.mxu0 0
          %531 = vmatprep.subr.bf16.mxu0 0
          %532 = vmatpush1.bf16.msra.mxu0 0
          %533 = vmatprep.subr.bf16.mxu0 0
          %534 = vmatpush1.bf16.msra.mxu0 0
          %535 = vmatprep.subr.bf16.mxu0 0
          %536 = vmatpush1.bf16.msra.mxu0 0
          %537 = vmatprep.subr.bf16.mxu0 0
          %538 = vmatpush1.bf16.msra.mxu0 0
          %539 = vmatprep.subr.bf16.mxu0 0
          %540 = vmatpush1.bf16.msra.mxu0 0
          %541 = vmatprep.subr.bf16.mxu0 0
          %542 = vmatpush1.bf16.msra.mxu0 0
          %543 = vmatprep.subr.bf16.mxu0 0
          %544 = vmatpush1.bf16.msra.mxu0 0
          %545 = vmatprep.subr.bf16.mxu0 0
          %546 = vmatpush1.bf16.msra.mxu0 0
          %547 = vmatprep.subr.bf16.mxu0 0
          %548 = vmatpush1.bf16.msra.mxu0 0
          %549 = vmatprep.mubr.bf16.mxu0 0
          %550 = vmatmul.mubr.bf16.gmra.mrb[0].mxu0 %v490
          %v551 = vpop.f32.mrb[0].mxu0
          %v552 = vadd.f32 0.0, %v551
          %v553 = vpop.f32.mrb[0].mxu0
          %v554 = vpop.f32.mrb[0].mxu0
          %v555 = vadd.f32 0.0, %v554
          %v556 = vpop.f32.mrb[0].mxu0
          %557 = vmatprep.mubr.bf16.mxu0 0
          %558 = vmatmul.mubr.bf16.gmra.mrb[0].mxu0 %v493
          %v559 = vpop.f32.mrb[0].mxu0
          %v560 = vadd.f32 0.0, %v559
          %v561 = vpop.f32.mrb[0].mxu0
          %v562 = vpop.f32.mrb[0].mxu0
          %v563 = vadd.f32 0.0, %v562
          %v564 = vpop.f32.mrb[0].mxu0
          %565 = vmatprep.mubr.bf16.mxu0 0
          %566 = vmatmul.mubr.bf16.gmra.mrb[0].mxu0 %v496
          %v567 = vpop.f32.mrb[0].mxu0
          %v568 = vadd.f32 0.0, %v567
          %v569 = vpop.f32.mrb[0].mxu0
          %v570 = vpop.f32.mrb[0].mxu0
          %v571 = vadd.f32 0.0, %v570
          %v572 = vpop.f32.mrb[0].mxu0
          %573 = vmatprep.mubr.bf16.mxu0 0
          %574 = vmatmul.mubr.bf16.gmra.mrb[0].mxu0 %v499
          %v575 = vpop.f32.mrb[0].mxu0
          %v576 = vadd.f32 0.0, %v575
          %v577 = vpop.f32.mrb[0].mxu0
          %v578 = vpop.f32.mrb[0].mxu0
          %v579 = vadd.f32 0.0, %v578
          %v580 = vpop.f32.mrb[0].mxu0
          %581 = vmatprep.mubr.bf16.mxu0 0
          %582 = vmatmul.mubr.bf16.gmra.mrb[0].mxu0 %v502
          %v583 = vpop.f32.mrb[0].mxu0
          %v584 = vadd.f32 0.0, %v583
          %v585 = vpop.f32.mrb[0].mxu0
          %v586 = vpop.f32.mrb[0].mxu0
          %v587 = vadd.f32 0.0, %v586
          %v588 = vpop.f32.mrb[0].mxu0
          %589 = vmatprep.mubr.bf16.mxu0 0
          %590 = vmatmul.mubr.bf16.gmra.mrb[0].mxu0 %v505
          %v591 = vpop.f32.mrb[0].mxu0
          %v592 = vadd.f32 0.0, %v591
          %v593 = vpop.f32.mrb[0].mxu0
          %v594 = vpop.f32.mrb[0].mxu0
          %v595 = vadd.f32 0.0, %v594
          %v596 = vpop.f32.mrb[0].mxu0
          %597 = vmatprep.mubr.bf16.mxu0 0
          %598 = vmatmul.mubr.bf16.gmra.mrb[0].mxu0 %v508
          %v599 = vpop.f32.mrb[0].mxu0
          %v600 = vadd.f32 0.0, %v599
          %v601 = vpop.f32.mrb[0].mxu0
          %v602 = vpop.f32.mrb[0].mxu0
          %v603 = vadd.f32 0.0, %v602
          %v604 = vpop.f32.mrb[0].mxu0
          %605 = vmatprep.mubr.bf16.mxu0 0
          %606 = vmatmul.mubr.bf16.gmra.mrb[0].mxu0 %v511
          %v607 = vpop.f32.mrb[0].mxu0
          %v608 = vadd.f32 0.0, %v607
          %v609 = vpop.f32.mrb[0].mxu0
          %v610 = vpop.f32.mrb[0].mxu0
          %v611 = vadd.f32 0.0, %v610
          %v612 = vpop.f32.mrb[0].mxu0
          %613 = vdwg.mxu0
          %v614 = vld [vmem:[#allocation3] sm:$0xff]
          %v615 = vld [vmem:[#allocation3 + $0x8] sm:$0xff]
          %v616 = vld [vmem:[#allocation3 + $0x10] sm:$0xff]
          %v617 = vld [vmem:[#allocation3 + $0x18] sm:$0xff]
          %v618 = vld [vmem:[#allocation3 + $0x20] sm:$0xff]
          %v619 = vld [vmem:[#allocation3 + $0x28] sm:$0xff]
          %v620 = vld [vmem:[#allocation3 + $0x30] sm:$0xff]
          %v621 = vld [vmem:[#allocation3 + $0x38] sm:$0xff]
          %v622 = vld [vmem:[#allocation3 + $0x40] sm:$0xff]
          %v623 = vld [vmem:[#allocation3 + $0x48] sm:$0xff]
          %v624 = vld [vmem:[#allocation3 + $0x50] sm:$0xff]
          %v625 = vld [vmem:[#allocation3 + $0x58] sm:$0xff]
          %v626 = vld [vmem:[#allocation3 + $0x60] sm:$0xff]
          %v627 = vld [vmem:[#allocation3 + $0x68] sm:$0xff]
          %v628 = vld [vmem:[#allocation3 + $0x70] sm:$0xff]
          %v629 = vld [vmem:[#allocation3 + $0x78] sm:$0xff]
          %v630 = vld [vmem:[%s358] sm:$0xf]
          %v631 = vld [vmem:[%s358 + $0x4] sm:$0xf]
          %v632 = vld [vmem:[%s358 + $0x8] sm:$0xf]
          %v633 = vld [vmem:[%s358 + $0xc] sm:$0xf]
          %v634 = vld [vmem:[%s358 + $0x10] sm:$0xf]
          %v635 = vld [vmem:[%s358 + $0x14] sm:$0xf]
          %v636 = vld [vmem:[%s358 + $0x18] sm:$0xf]
          %v637 = vld [vmem:[%s358 + $0x1c] sm:$0xf]
          %v638 = vld [vmem:[%s358 + $0x20] sm:$0xf]
          %v639 = vld [vmem:[%s358 + $0x24] sm:$0xf]
          %v640 = vld [vmem:[%s358 + $0x28] sm:$0xf]
          %v641 = vld [vmem:[%s358 + $0x2c] sm:$0xf]
          %v642 = vld [vmem:[%s358 + $0x30] sm:$0xf]
          %v643 = vld [vmem:[%s358 + $0x34] sm:$0xf]
          %v644 = vld [vmem:[%s358 + $0x38] sm:$0xf]
          %v645 = vld [vmem:[%s358 + $0x3c] sm:$0xf]
          %v646 = vpack.c.bf16 %v555, %v552
          %v647 = vpack.c.bf16 %v563, %v560
          %v648 = vpack.c.bf16 %v571, %v568
          %v649 = vpack.c.bf16 %v579, %v576
          %v650 = vpack.c.bf16 %v587, %v584
          %v651 = vpack.c.bf16 %v595, %v592
          %v652 = vpack.c.bf16 %v603, %v600
          %v653 = vpack.c.bf16 %v611, %v608
          %v670 = vunpack.c.l.b16 %v630
          %v671 = vunpack.c.l.b16 %v631
          %v672 = vunpack.c.l.b16 %v632
          %v673 = vunpack.c.l.b16 %v633
          %v674 = vunpack.c.l.b16 %v634
          %v675 = vunpack.c.l.b16 %v635
          %v676 = vunpack.c.l.b16 %v636
          %v677 = vunpack.c.l.b16 %v637
          %v678 = vunpack.c.l.b16 %v638
          %v679 = vunpack.c.l.b16 %v639
          %v680 = vunpack.c.l.b16 %v640
          %v681 = vunpack.c.l.b16 %v641
          %v682 = vunpack.c.l.b16 %v642
          %v683 = vunpack.c.l.b16 %v643
          %v684 = vunpack.c.l.b16 %v644
          %v685 = vunpack.c.l.b16 %v645
          %v686 = vpack.c.b16 %v671, %v670
          %v687 = vpack.c.b16 %v673, %v672
          %v688 = vpack.c.b16 %v675, %v674
          %v689 = vpack.c.b16 %v677, %v676
          %v690 = vpack.c.b16 %v679, %v678
          %v691 = vpack.c.b16 %v681, %v680
          %v692 = vpack.c.b16 %v683, %v682
          %v693 = vpack.c.b16 %v685, %v684
          %702 = vmatprep.subr.bf16.mxu0 0
          %703 = vmatpush1.bf16.msra.mxu0 %v646
          %704 = vmatprep.subr.bf16.mxu0 0
          %705 = vmatpush1.bf16.msra.mxu0 %v647
          %706 = vmatprep.subr.bf16.mxu0 0
          %707 = vmatpush1.bf16.msra.mxu0 %v648
          %708 = vmatprep.subr.bf16.mxu0 0
          %709 = vmatpush1.bf16.msra.mxu0 %v649
          %710 = vmatprep.subr.bf16.mxu0 0
          %711 = vmatpush1.bf16.msra.mxu0 %v650
          %712 = vmatprep.subr.bf16.mxu0 0
          %713 = vmatpush1.bf16.msra.mxu0 %v651
          %714 = vmatprep.subr.bf16.mxu0 0
          %715 = vmatpush1.bf16.msra.mxu0 %v652
          %716 = vmatprep.subr.bf16.mxu0 0
          %717 = vmatpush1.bf16.msra.mxu0 %v653
          %718 = vmatprep.subr.bf16.mxu0 0
          %719 = vmatpush1.bf16.msra.mxu0 0
          %720 = vmatprep.subr.bf16.mxu0 0
          %721 = vmatpush1.bf16.msra.mxu0 0
          %722 = vmatprep.subr.bf16.mxu0 0
          %723 = vmatpush1.bf16.msra.mxu0 0
          %724 = vmatprep.subr.bf16.mxu0 0
          %725 = vmatpush1.bf16.msra.mxu0 0
          %726 = vmatprep.subr.bf16.mxu0 0
          %727 = vmatpush1.bf16.msra.mxu0 0
          %728 = vmatprep.subr.bf16.mxu0 0
          %729 = vmatpush1.bf16.msra.mxu0 0
          %730 = vmatprep.subr.bf16.mxu0 0
          %731 = vmatpush1.bf16.msra.mxu0 0
          %732 = vmatprep.subr.bf16.mxu0 0
          %733 = vmatpush1.bf16.msra.mxu0 0
          %734 = vmatprep.mubr.bf16.mxu0 0
          %735 = vmatmul.mubr.bf16.gmra.mrb[0].mxu0 %v686
          %v736 = vpop.f32.mrb[0].mxu0
          %v737 = vadd.f32 0.0, %v736
          %v738 = vpop.f32.mrb[0].mxu0
          %v739 = vpop.f32.mrb[0].mxu0
          %v740 = vadd.f32 0.0, %v739
          %v741 = vpop.f32.mrb[0].mxu0
          %742 = vmatprep.mubr.bf16.mxu0 0
          %743 = vmatmul.mubr.bf16.gmra.mrb[0].mxu0 %v687
          %v744 = vpop.f32.mrb[0].mxu0
          %v745 = vadd.f32 0.0, %v744
          %v746 = vpop.f32.mrb[0].mxu0
          %v747 = vpop.f32.mrb[0].mxu0
          %v748 = vadd.f32 0.0, %v747
          %v749 = vpop.f32.mrb[0].mxu0
          %750 = vmatprep.mubr.bf16.mxu0 0
          %751 = vmatmul.mubr.bf16.gmra.mrb[0].mxu0 %v688
          %v752 = vpop.f32.mrb[0].mxu0
          %v753 = vadd.f32 0.0, %v752
          %v754 = vpop.f32.mrb[0].mxu0
          %v755 = vpop.f32.mrb[0].mxu0
          %v756 = vadd.f32 0.0, %v755
          %v757 = vpop.f32.mrb[0].mxu0
          %758 = vmatprep.mubr.bf16.mxu0 0
          %759 = vmatmul.mubr.bf16.gmra.mrb[0].mxu0 %v689
          %v760 = vpop.f32.mrb[0].mxu0
          %v761 = vadd.f32 0.0, %v760
          %v762 = vpop.f32.mrb[0].mxu0
          %v763 = vpop.f32.mrb[0].mxu0
          %v764 = vadd.f32 0.0, %v763
          %v765 = vpop.f32.mrb[0].mxu0
          %766 = vmatprep.mubr.bf16.mxu0 0
          %767 = vmatmul.mubr.bf16.gmra.mrb[0].mxu0 %v690
          %v768 = vpop.f32.mrb[0].mxu0
          %v769 = vadd.f32 0.0, %v768
          %v770 = vpop.f32.mrb[0].mxu0
          %v771 = vpop.f32.mrb[0].mxu0
          %v772 = vadd.f32 0.0, %v771
          %v773 = vpop.f32.mrb[0].mxu0
          %774 = vmatprep.mubr.bf16.mxu0 0
          %775 = vmatmul.mubr.bf16.gmra.mrb[0].mxu0 %v691
          %v776 = vpop.f32.mrb[0].mxu0
          %v777 = vadd.f32 0.0, %v776
          %v778 = vpop.f32.mrb[0].mxu0
          %v779 = vpop.f32.mrb[0].mxu0
          %v780 = vadd.f32 0.0, %v779
          %v781 = vpop.f32.mrb[0].mxu0
          %782 = vmatprep.mubr.bf16.mxu0 0
          %783 = vmatmul.mubr.bf16.gmra.mrb[0].mxu0 %v692
          %v784 = vpop.f32.mrb[0].mxu0
          %v785 = vadd.f32 0.0, %v784
          %v786 = vpop.f32.mrb[0].mxu0
          %v787 = vpop.f32.mrb[0].mxu0
          %v788 = vadd.f32 0.0, %v787
          %v789 = vpop.f32.mrb[0].mxu0
          %790 = vmatprep.mubr.bf16.mxu0 0
          %791 = vmatmul.mubr.bf16.gmra.mrb[0].mxu0 %v693
          %v792 = vpop.f32.mrb[0].mxu0
          %v793 = vadd.f32 0.0, %v792
          %v794 = vpop.f32.mrb[0].mxu0
          %v795 = vpop.f32.mrb[0].mxu0
          %v796 = vadd.f32 0.0, %v795
          %v797 = vpop.f32.mrb[0].mxu0
          %798 = vdwg.mxu0
          %v799 = vadd.f32 %v614, %v737
          %v800 = vadd.f32 %v615, %v740
          %v801 = vadd.f32 %v616, %v745
          %v802 = vadd.f32 %v617, %v748
          %v803 = vadd.f32 %v618, %v753
          %v804 = vadd.f32 %v619, %v756
          %v805 = vadd.f32 %v620, %v761
          %v806 = vadd.f32 %v621, %v764
          %v807 = vadd.f32 %v622, %v769
          %v808 = vadd.f32 %v623, %v772
          %v809 = vadd.f32 %v624, %v777
          %v810 = vadd.f32 %v625, %v780
          %v811 = vadd.f32 %v626, %v785
          %v812 = vadd.f32 %v627, %v788
          %v813 = vadd.f32 %v628, %v793
          %v814 = vadd.f32 %v629, %v796
          %815 = vst [vmem:[#allocation3] sm:$0xff] %v799
          %816 = vst [vmem:[#allocation3 + $0x8] sm:$0xff] %v800
          %817 = vst [vmem:[#allocation3 + $0x10] sm:$0xff] %v801
          %818 = vst [vmem:[#allocation3 + $0x18] sm:$0xff] %v802
          %819 = vst [vmem:[#allocation3 + $0x20] sm:$0xff] %v803
          %820 = vst [vmem:[#allocation3 + $0x28] sm:$0xff] %v804
          %821 = vst [vmem:[#allocation3 + $0x30] sm:$0xff] %v805
          %822 = vst [vmem:[#allocation3 + $0x38] sm:$0xff] %v806
          %823 = vst [vmem:[#allocation3 + $0x40] sm:$0xff] %v807
          %824 = vst [vmem:[#allocation3 + $0x48] sm:$0xff] %v808
          %825 = vst [vmem:[#allocation3 + $0x50] sm:$0xff] %v809
          %826 = vst [vmem:[#allocation3 + $0x58] sm:$0xff] %v810
          %827 = vst [vmem:[#allocation3 + $0x60] sm:$0xff] %v811
          %828 = vst [vmem:[#allocation3 + $0x68] sm:$0xff] %v812
          %829 = vst [vmem:[#allocation3 + $0x70] sm:$0xff] %v813
          %830 = vst [vmem:[#allocation3 + $0x78] sm:$0xff] %v814
          %p831 = scmp.eq.s32.totalorder %s24, 2
          // Predicated region
          $region94: #{gcn_forward.1} parent=92 // pred_check
            %p832 = pneg %p831
          $region95: #{gcn_forward.1} parent=92 // pred_check_branch
            %834 = sbr.rel (%p832) target = $region97
          $region96: #{gcn_forward.1} parent=92 // pred_region
            %v835 = vld [vmem:[#allocation3] sm:$0xff]
            %v836 = vld [vmem:[#allocation3 + $0x8] sm:$0xff]
            %v837 = vld [vmem:[#allocation3 + $0x10] sm:$0xff]
            %v838 = vld [vmem:[#allocation3 + $0x18] sm:$0xff]
            %v839 = vld [vmem:[#allocation3 + $0x20] sm:$0xff]
            %v840 = vld [vmem:[#allocation3 + $0x28] sm:$0xff]
            %v841 = vld [vmem:[#allocation3 + $0x30] sm:$0xff]
            %v842 = vld [vmem:[#allocation3 + $0x38] sm:$0xff]
            %v843 = vld [vmem:[#allocation3 + $0x40] sm:$0xff]
            %v844 = vld [vmem:[#allocation3 + $0x48] sm:$0xff]
            %v845 = vld [vmem:[#allocation3 + $0x50] sm:$0xff]
            %v846 = vld [vmem:[#allocation3 + $0x58] sm:$0xff]
            %v847 = vld [vmem:[#allocation3 + $0x60] sm:$0xff]
            %v848 = vld [vmem:[#allocation3 + $0x68] sm:$0xff]
            %v849 = vld [vmem:[#allocation3 + $0x70] sm:$0xff]
            %v850 = vld [vmem:[#allocation3 + $0x78] sm:$0xff]
            %v851 = vld [vmem:[%s3] sm:$0x1]
            %v853 = vlaneseq
            %v854 = vshrl.u32 %v853, 7
            %v855 = vsub.s32 0, %v854
            %v856 = vrot.slane %v851, %v855
            %v858 = vadd.f32 %v835, %v856
            %v859 = vadd.f32 %v836, %v856
            %v860 = vadd.f32 %v837, %v856
            %v861 = vadd.f32 %v838, %v856
            %v862 = vadd.f32 %v839, %v856
            %v863 = vadd.f32 %v840, %v856
            %v864 = vadd.f32 %v841, %v856
            %v865 = vadd.f32 %v842, %v856
            %v866 = vadd.f32 %v843, %v856
            %v867 = vadd.f32 %v844, %v856
            %v868 = vadd.f32 %v845, %v856
            %v869 = vadd.f32 %v846, %v856
            %v870 = vadd.f32 %v847, %v856
            %v871 = vadd.f32 %v848, %v856
            %v872 = vadd.f32 %v849, %v856
            %v873 = vadd.f32 %v850, %v856
            %v874 = vmax.f32 %v858, 0.0
            %v875 = vmax.f32 %v859, 0.0
            %v876 = vmax.f32 %v860, 0.0
            %v877 = vmax.f32 %v861, 0.0
            %v878 = vmax.f32 %v862, 0.0
            %v879 = vmax.f32 %v863, 0.0
            %v880 = vmax.f32 %v864, 0.0
            %v881 = vmax.f32 %v865, 0.0
            %v882 = vmax.f32 %v866, 0.0
            %v883 = vmax.f32 %v867, 0.0
            %v884 = vmax.f32 %v868, 0.0
            %v885 = vmax.f32 %v869, 0.0
            %v886 = vmax.f32 %v870, 0.0
            %v887 = vmax.f32 %v871, 0.0
            %v888 = vmax.f32 %v872, 0.0
            %v889 = vmax.f32 %v873, 0.0
            %s890 = smul.u32 %s23, 128
            %v891 = vpack.c.bf16 %v875, %v874
            %v892 = vpack.c.bf16 %v877, %v876
            %v893 = vpack.c.bf16 %v879, %v878
            %v894 = vpack.c.bf16 %v881, %v880
            %v895 = vpack.c.bf16 %v883, %v882
            %v896 = vpack.c.bf16 %v885, %v884
            %v897 = vpack.c.bf16 %v887, %v886
            %v898 = vpack.c.bf16 %v889, %v888
            %s899 = sshra.s32 %s890, 4
            %s900 = sand.u32 %s890, 15
            %s901 = smul.addr %s899, 8
            %s902 = scalar_lea.vmem [#allocation2], %s901
            %903 = vst [vmem:[%s902] sm:$0xff] %v891
            %904 = vst [vmem:[%s902 + $0x8] sm:$0xff] %v892
            %905 = vst [vmem:[%s902 + $0x10] sm:$0xff] %v893
            %906 = vst [vmem:[%s902 + $0x18] sm:$0xff] %v894
            %907 = vst [vmem:[%s902 + $0x20] sm:$0xff] %v895
            %908 = vst [vmem:[%s902 + $0x28] sm:$0xff] %v896
            %909 = vst [vmem:[%s902 + $0x30] sm:$0xff] %v897
            %910 = vst [vmem:[%s902 + $0x38] sm:$0xff] %v898
          $region97: #{gcn_forward.1} parent=92 // pred_fallthru
            _
        $region93: #{gcn_forward.1} parent=80 // pred_fallthru
          _
        %p911 = scmp.eq.s32.totalorder %s22, 1
        // Predicated region
        $region98: #{gcn_forward.1} parent=80 // pred_check
          %p912 = pneg %p911
        $region99: #{gcn_forward.1} parent=80 // pred_check_branch
          %914 = sbr.rel (%p912) target = $region101
        $region100: #{gcn_forward.1} parent=80 // pred_region
          %s915 = smul.u32 %s24, 128
          %s916 = sshra.s32 %s915, 4
          %s917 = sand.u32 %s915, 15
          %s918 = smul.addr %s916, 8
          %s919 = scalar_lea.vmem [#allocation2], %s918
          %v920 = vld [vmem:[%s919] sm:$0xff]
          %v921 = vld [vmem:[%s919 + $0x8] sm:$0xff]
          %v922 = vld [vmem:[%s919 + $0x10] sm:$0xff]
          %v923 = vld [vmem:[%s919 + $0x18] sm:$0xff]
          %v924 = vld [vmem:[%s919 + $0x20] sm:$0xff]
          %v925 = vld [vmem:[%s919 + $0x28] sm:$0xff]
          %v926 = vld [vmem:[%s919 + $0x30] sm:$0xff]
          %v927 = vld [vmem:[%s919 + $0x38] sm:$0xff]
          %v928 = vld [vmem:[#allocation3] sm:$0xff]
          %v929 = vld [vmem:[#allocation3 + $0x8] sm:$0xff]
          %v930 = vld [vmem:[#allocation3 + $0x10] sm:$0xff]
          %v931 = vld [vmem:[#allocation3 + $0x18] sm:$0xff]
          %v932 = vld [vmem:[#allocation3 + $0x20] sm:$0xff]
          %v933 = vld [vmem:[#allocation3 + $0x28] sm:$0xff]
          %v934 = vld [vmem:[#allocation3 + $0x30] sm:$0xff]
          %v935 = vld [vmem:[#allocation3 + $0x38] sm:$0xff]
          %v936 = vld [vmem:[#allocation3 + $0x40] sm:$0xff]
          %v937 = vld [vmem:[#allocation3 + $0x48] sm:$0xff]
          %v938 = vld [vmem:[#allocation3 + $0x50] sm:$0xff]
          %v939 = vld [vmem:[#allocation3 + $0x58] sm:$0xff]
          %v940 = vld [vmem:[#allocation3 + $0x60] sm:$0xff]
          %v941 = vld [vmem:[#allocation3 + $0x68] sm:$0xff]
          %v942 = vld [vmem:[#allocation3 + $0x70] sm:$0xff]
          %v943 = vld [vmem:[#allocation3 + $0x78] sm:$0xff]
          %v944 = vld [vmem:[%s358] sm:$0xf]
          %v945 = vld [vmem:[%s358 + $0x4] sm:$0xf]
          %v946 = vld [vmem:[%s358 + $0x8] sm:$0xf]
          %v947 = vld [vmem:[%s358 + $0xc] sm:$0xf]
          %v948 = vld [vmem:[%s358 + $0x10] sm:$0xf]
          %v949 = vld [vmem:[%s358 + $0x14] sm:$0xf]
          %v950 = vld [vmem:[%s358 + $0x18] sm:$0xf]
          %v951 = vld [vmem:[%s358 + $0x1c] sm:$0xf]
          %v952 = vld [vmem:[%s358 + $0x20] sm:$0xf]
          %v953 = vld [vmem:[%s358 + $0x24] sm:$0xf]
          %v954 = vld [vmem:[%s358 + $0x28] sm:$0xf]
          %v955 = vld [vmem:[%s358 + $0x2c] sm:$0xf]
          %v956 = vld [vmem:[%s358 + $0x30] sm:$0xf]
          %v957 = vld [vmem:[%s358 + $0x34] sm:$0xf]
          %v958 = vld [vmem:[%s358 + $0x38] sm:$0xf]
          %v959 = vld [vmem:[%s358 + $0x3c] sm:$0xf]
          %v976 = vunpack.c.l.b16 %v944
          %v977 = vunpack.c.l.b16 %v945
          %v978 = vunpack.c.l.b16 %v946
          %v979 = vunpack.c.l.b16 %v947
          %v980 = vunpack.c.l.b16 %v948
          %v981 = vunpack.c.l.b16 %v949
          %v982 = vunpack.c.l.b16 %v950
          %v983 = vunpack.c.l.b16 %v951
          %v984 = vunpack.c.l.b16 %v952
          %v985 = vunpack.c.l.b16 %v953
          %v986 = vunpack.c.l.b16 %v954
          %v987 = vunpack.c.l.b16 %v955
          %v988 = vunpack.c.l.b16 %v956
          %v989 = vunpack.c.l.b16 %v957
          %v990 = vunpack.c.l.b16 %v958
          %v991 = vunpack.c.l.b16 %v959
          %v992 = vpack.c.b16 %v977, %v976
          %v993 = vpack.c.b16 %v979, %v978
          %v994 = vpack.c.b16 %v981, %v980
          %v995 = vpack.c.b16 %v983, %v982
          %v996 = vpack.c.b16 %v985, %v984
          %v997 = vpack.c.b16 %v987, %v986
          %v998 = vpack.c.b16 %v989, %v988
          %v999 = vpack.c.b16 %v991, %v990
          %1008 = vmatprep.subr.bf16.mxu0 0
          %1009 = vmatpush1.bf16.msra.mxu0 %v920
          %1010 = vmatprep.subr.bf16.mxu0 0
          %1011 = vmatpush1.bf16.msra.mxu0 %v921
          %1012 = vmatprep.subr.bf16.mxu0 0
          %1013 = vmatpush1.bf16.msra.mxu0 %v922
          %1014 = vmatprep.subr.bf16.mxu0 0
          %1015 = vmatpush1.bf16.msra.mxu0 %v923
          %1016 = vmatprep.subr.bf16.mxu0 0
          %1017 = vmatpush1.bf16.msra.mxu0 %v924
          %1018 = vmatprep.subr.bf16.mxu0 0
          %1019 = vmatpush1.bf16.msra.mxu0 %v925
          %1020 = vmatprep.subr.bf16.mxu0 0
          %1021 = vmatpush1.bf16.msra.mxu0 %v926
          %1022 = vmatprep.subr.bf16.mxu0 0
          %1023 = vmatpush1.bf16.msra.mxu0 %v927
          %1024 = vmatprep.subr.bf16.mxu0 0
          %1025 = vmatpush1.bf16.msra.mxu0 0
          %1026 = vmatprep.subr.bf16.mxu0 0
          %1027 = vmatpush1.bf16.msra.mxu0 0
          %1028 = vmatprep.subr.bf16.mxu0 0
          %1029 = vmatpush1.bf16.msra.mxu0 0
          %1030 = vmatprep.subr.bf16.mxu0 0
          %1031 = vmatpush1.bf16.msra.mxu0 0
          %1032 = vmatprep.subr.bf16.mxu0 0
          %1033 = vmatpush1.bf16.msra.mxu0 0
          %1034 = vmatprep.subr.bf16.mxu0 0
          %1035 = vmatpush1.bf16.msra.mxu0 0
          %1036 = vmatprep.subr.bf16.mxu0 0
          %1037 = vmatpush1.bf16.msra.mxu0 0
          %1038 = vmatprep.subr.bf16.mxu0 0
          %1039 = vmatpush1.bf16.msra.mxu0 0
          %1040 = vmatprep.mubr.bf16.mxu0 0
          %1041 = vmatmul.mubr.bf16.gmra.mrb[0].mxu0 %v992
          %v1042 = vpop.f32.mrb[0].mxu0
          %v1043 = vadd.f32 0.0, %v1042
          %v1044 = vpop.f32.mrb[0].mxu0
          %v1045 = vpop.f32.mrb[0].mxu0
          %v1046 = vadd.f32 0.0, %v1045
          %v1047 = vpop.f32.mrb[0].mxu0
          %1048 = vmatprep.mubr.bf16.mxu0 0
          %1049 = vmatmul.mubr.bf16.gmra.mrb[0].mxu0 %v993
          %v1050 = vpop.f32.mrb[0].mxu0
          %v1051 = vadd.f32 0.0, %v1050
          %v1052 = vpop.f32.mrb[0].mxu0
          %v1053 = vpop.f32.mrb[0].mxu0
          %v1054 = vadd.f32 0.0, %v1053
          %v1055 = vpop.f32.mrb[0].mxu0
          %1056 = vmatprep.mubr.bf16.mxu0 0
          %1057 = vmatmul.mubr.bf16.gmra.mrb[0].mxu0 %v994
          %v1058 = vpop.f32.mrb[0].mxu0
          %v1059 = vadd.f32 0.0, %v1058
          %v1060 = vpop.f32.mrb[0].mxu0
          %v1061 = vpop.f32.mrb[0].mxu0
          %v1062 = vadd.f32 0.0, %v1061
          %v1063 = vpop.f32.mrb[0].mxu0
          %1064 = vmatprep.mubr.bf16.mxu0 0
          %1065 = vmatmul.mubr.bf16.gmra.mrb[0].mxu0 %v995
          %v1066 = vpop.f32.mrb[0].mxu0
          %v1067 = vadd.f32 0.0, %v1066
          %v1068 = vpop.f32.mrb[0].mxu0
          %v1069 = vpop.f32.mrb[0].mxu0
          %v1070 = vadd.f32 0.0, %v1069
          %v1071 = vpop.f32.mrb[0].mxu0
          %1072 = vmatprep.mubr.bf16.mxu0 0
          %1073 = vmatmul.mubr.bf16.gmra.mrb[0].mxu0 %v996
          %v1074 = vpop.f32.mrb[0].mxu0
          %v1075 = vadd.f32 0.0, %v1074
          %v1076 = vpop.f32.mrb[0].mxu0
          %v1077 = vpop.f32.mrb[0].mxu0
          %v1078 = vadd.f32 0.0, %v1077
          %v1079 = vpop.f32.mrb[0].mxu0
          %1080 = vmatprep.mubr.bf16.mxu0 0
          %1081 = vmatmul.mubr.bf16.gmra.mrb[0].mxu0 %v997
          %v1082 = vpop.f32.mrb[0].mxu0
          %v1083 = vadd.f32 0.0, %v1082
          %v1084 = vpop.f32.mrb[0].mxu0
          %v1085 = vpop.f32.mrb[0].mxu0
          %v1086 = vadd.f32 0.0, %v1085
          %v1087 = vpop.f32.mrb[0].mxu0
          %1088 = vmatprep.mubr.bf16.mxu0 0
          %1089 = vmatmul.mubr.bf16.gmra.mrb[0].mxu0 %v998
          %v1090 = vpop.f32.mrb[0].mxu0
          %v1091 = vadd.f32 0.0, %v1090
          %v1092 = vpop.f32.mrb[0].mxu0
          %v1093 = vpop.f32.mrb[0].mxu0
          %v1094 = vadd.f32 0.0, %v1093
          %v1095 = vpop.f32.mrb[0].mxu0
          %1096 = vmatprep.mubr.bf16.mxu0 0
          %1097 = vmatmul.mubr.bf16.gmra.mrb[0].mxu0 %v999
          %v1098 = vpop.f32.mrb[0].mxu0
          %v1099 = vadd.f32 0.0, %v1098
          %v1100 = vpop.f32.mrb[0].mxu0
          %v1101 = vpop.f32.mrb[0].mxu0
          %v1102 = vadd.f32 0.0, %v1101
          %v1103 = vpop.f32.mrb[0].mxu0
          %1104 = vdwg.mxu0
          %v1105 = vadd.f32 %v928, %v1043
          %v1106 = vadd.f32 %v929, %v1046
          %v1107 = vadd.f32 %v930, %v1051
          %v1108 = vadd.f32 %v931, %v1054
          %v1109 = vadd.f32 %v932, %v1059
          %v1110 = vadd.f32 %v933, %v1062
          %v1111 = vadd.f32 %v934, %v1067
          %v1112 = vadd.f32 %v935, %v1070
          %v1113 = vadd.f32 %v936, %v1075
          %v1114 = vadd.f32 %v937, %v1078
          %v1115 = vadd.f32 %v938, %v1083
          %v1116 = vadd.f32 %v939, %v1086
          %v1117 = vadd.f32 %v940, %v1091
          %v1118 = vadd.f32 %v941, %v1094
          %v1119 = vadd.f32 %v942, %v1099
          %v1120 = vadd.f32 %v943, %v1102
          %1121 = vst [vmem:[#allocation3] sm:$0xff] %v1105
          %1122 = vst [vmem:[#allocation3 + $0x8] sm:$0xff] %v1106
          %1123 = vst [vmem:[#allocation3 + $0x10] sm:$0xff] %v1107
          %1124 = vst [vmem:[#allocation3 + $0x18] sm:$0xff] %v1108
          %1125 = vst [vmem:[#allocation3 + $0x20] sm:$0xff] %v1109
          %1126 = vst [vmem:[#allocation3 + $0x28] sm:$0xff] %v1110
          %1127 = vst [vmem:[#allocation3 + $0x30] sm:$0xff] %v1111
          %1128 = vst [vmem:[#allocation3 + $0x38] sm:$0xff] %v1112
          %1129 = vst [vmem:[#allocation3 + $0x40] sm:$0xff] %v1113
          %1130 = vst [vmem:[#allocation3 + $0x48] sm:$0xff] %v1114
          %1131 = vst [vmem:[#allocation3 + $0x50] sm:$0xff] %v1115
          %1132 = vst [vmem:[#allocation3 + $0x58] sm:$0xff] %v1116
          %1133 = vst [vmem:[#allocation3 + $0x60] sm:$0xff] %v1117
          %1134 = vst [vmem:[#allocation3 + $0x68] sm:$0xff] %v1118
          %1135 = vst [vmem:[#allocation3 + $0x70] sm:$0xff] %v1119
          %1136 = vst [vmem:[#allocation3 + $0x78] sm:$0xff] %v1120
          %p1137 = scmp.eq.s32.totalorder %s24, 2
          // Predicated region
          $region102: #{gcn_forward.1} parent=100 // pred_check
            %p1138 = pneg %p1137
          $region103: #{gcn_forward.1} parent=100 // pred_check_branch
            %1140 = sbr.rel (%p1138) target = $region105
          $region104: #{gcn_forward.1} parent=100 // pred_region
            %v1141 = vld [vmem:[#allocation3] sm:$0xff]
            %v1142 = vld [vmem:[#allocation3 + $0x8] sm:$0xff]
            %v1143 = vld [vmem:[#allocation3 + $0x10] sm:$0xff]
            %v1144 = vld [vmem:[#allocation3 + $0x18] sm:$0xff]
            %v1145 = vld [vmem:[#allocation3 + $0x20] sm:$0xff]
            %v1146 = vld [vmem:[#allocation3 + $0x28] sm:$0xff]
            %v1147 = vld [vmem:[#allocation3 + $0x30] sm:$0xff]
            %v1148 = vld [vmem:[#allocation3 + $0x38] sm:$0xff]
            %v1149 = vld [vmem:[#allocation3 + $0x40] sm:$0xff]
            %v1150 = vld [vmem:[#allocation3 + $0x48] sm:$0xff]
            %v1151 = vld [vmem:[#allocation3 + $0x50] sm:$0xff]
            %v1152 = vld [vmem:[#allocation3 + $0x58] sm:$0xff]
            %v1153 = vld [vmem:[#allocation3 + $0x60] sm:$0xff]
            %v1154 = vld [vmem:[#allocation3 + $0x68] sm:$0xff]
            %v1155 = vld [vmem:[#allocation3 + $0x70] sm:$0xff]
            %v1156 = vld [vmem:[#allocation3 + $0x78] sm:$0xff]
            %v1157 = vpack.c.bf16 %v1142, %v1141
            %v1158 = vpack.c.bf16 %v1144, %v1143
            %v1159 = vpack.c.bf16 %v1146, %v1145
            %v1160 = vpack.c.bf16 %v1148, %v1147
            %v1161 = vpack.c.bf16 %v1150, %v1149
            %v1162 = vpack.c.bf16 %v1152, %v1151
            %v1163 = vpack.c.bf16 %v1154, %v1153
            %v1164 = vpack.c.bf16 %v1156, %v1155
            %v1165 = vld [vmem:[%s4] sm:$0xf]
            %v1166 = vld [vmem:[%s4 + $0x4] sm:$0xf]
            %v1167 = vld [vmem:[%s4 + $0x8] sm:$0xf]
            %v1168 = vld [vmem:[%s4 + $0xc] sm:$0xf]
            %v1169 = vld [vmem:[%s4 + $0x10] sm:$0xf]
            %v1170 = vld [vmem:[%s4 + $0x14] sm:$0xf]
            %v1171 = vld [vmem:[%s4 + $0x18] sm:$0xf]
            %v1172 = vld [vmem:[%s4 + $0x1c] sm:$0xf]
            %v1173 = vld [vmem:[%s4 + $0x20] sm:$0xf]
            %v1174 = vld [vmem:[%s4 + $0x24] sm:$0xf]
            %v1175 = vld [vmem:[%s4 + $0x28] sm:$0xf]
            %v1176 = vld [vmem:[%s4 + $0x2c] sm:$0xf]
            %v1177 = vld [vmem:[%s4 + $0x30] sm:$0xf]
            %v1178 = vld [vmem:[%s4 + $0x34] sm:$0xf]
            %v1179 = vld [vmem:[%s4 + $0x38] sm:$0xf]
            %v1180 = vld [vmem:[%s4 + $0x3c] sm:$0xf]
            %v1181 = vld [vmem:[%s5] sm:$0x1]
            %v1183 = vlaneseq
            %v1184 = vshrl.u32 %v1183, 7
            %v1185 = vsub.s32 0, %v1184
            %v1186 = vrot.slane %v1181, %v1185
            %v1204 = vunpack.c.l.b16 %v1165
            %v1205 = vunpack.c.l.b16 %v1166
            %v1206 = vunpack.c.l.b16 %v1167
            %v1207 = vunpack.c.l.b16 %v1168
            %v1208 = vunpack.c.l.b16 %v1169
            %v1209 = vunpack.c.l.b16 %v1170
            %v1210 = vunpack.c.l.b16 %v1171
            %v1211 = vunpack.c.l.b16 %v1172
            %v1212 = vunpack.c.l.b16 %v1173
            %v1213 = vunpack.c.l.b16 %v1174
            %v1214 = vunpack.c.l.b16 %v1175
            %v1215 = vunpack.c.l.b16 %v1176
            %v1216 = vunpack.c.l.b16 %v1177
            %v1217 = vunpack.c.l.b16 %v1178
            %v1218 = vunpack.c.l.b16 %v1179
            %v1219 = vunpack.c.l.b16 %v1180
            %v1220 = vpack.c.b16 %v1205, %v1204
            %v1221 = vpack.c.b16 %v1207, %v1206
            %v1222 = vpack.c.b16 %v1209, %v1208
            %v1223 = vpack.c.b16 %v1211, %v1210
            %v1224 = vpack.c.b16 %v1213, %v1212
            %v1225 = vpack.c.b16 %v1215, %v1214
            %v1226 = vpack.c.b16 %v1217, %v1216
            %v1227 = vpack.c.b16 %v1219, %v1218
            %1236 = vmatprep.subr.bf16.mxu0 0
            %1237 = vmatpush1.bf16.msra.mxu0 %v1220
            %1238 = vmatprep.subr.bf16.mxu0 0
            %1239 = vmatpush1.bf16.msra.mxu0 %v1221
            %1240 = vmatprep.subr.bf16.mxu0 0
            %1241 = vmatpush1.bf16.msra.mxu0 %v1222
            %1242 = vmatprep.subr.bf16.mxu0 0
            %1243 = vmatpush1.bf16.msra.mxu0 %v1223
            %1244 = vmatprep.subr.bf16.mxu0 0
            %1245 = vmatpush1.bf16.msra.mxu0 %v1224
            %1246 = vmatprep.subr.bf16.mxu0 0
            %1247 = vmatpush1.bf16.msra.mxu0 %v1225
            %1248 = vmatprep.subr.bf16.mxu0 0
            %1249 = vmatpush1.bf16.msra.mxu0 %v1226
            %1250 = vmatprep.subr.bf16.mxu0 0
            %1251 = vmatpush1.bf16.msra.mxu0 %v1227
            %1252 = vmatprep.subr.bf16.mxu0 0
            %1253 = vmatpush1.bf16.msra.mxu0 0
            %1254 = vmatprep.subr.bf16.mxu0 0
            %1255 = vmatpush1.bf16.msra.mxu0 0
            %1256 = vmatprep.subr.bf16.mxu0 0
            %1257 = vmatpush1.bf16.msra.mxu0 0
            %1258 = vmatprep.subr.bf16.mxu0 0
            %1259 = vmatpush1.bf16.msra.mxu0 0
            %1260 = vmatprep.subr.bf16.mxu0 0
            %1261 = vmatpush1.bf16.msra.mxu0 0
            %1262 = vmatprep.subr.bf16.mxu0 0
            %1263 = vmatpush1.bf16.msra.mxu0 0
            %1264 = vmatprep.subr.bf16.mxu0 0
            %1265 = vmatpush1.bf16.msra.mxu0 0
            %1266 = vmatprep.subr.bf16.mxu0 0
            %1267 = vmatpush1.bf16.msra.mxu0 0
            %1268 = vmatprep.mubr.bf16.mxu0 0
            %1269 = vmatmul.mubr.bf16.gmra.mrb[0].mxu0 %v1157
            %v1270 = vpop.f32.mrb[0].mxu0
            %v1271 = vadd.f32 %v1186, %v1270
            %v1272 = vpop.f32.mrb[0].mxu0
            %v1273 = vpop.f32.mrb[0].mxu0
            %v1274 = vadd.f32 %v1186, %v1273
            %v1275 = vpop.f32.mrb[0].mxu0
            %1276 = vmatprep.mubr.bf16.mxu0 0
            %1277 = vmatmul.mubr.bf16.gmra.mrb[0].mxu0 %v1158
            %v1278 = vpop.f32.mrb[0].mxu0
            %v1279 = vadd.f32 %v1186, %v1278
            %v1280 = vpop.f32.mrb[0].mxu0
            %v1281 = vpop.f32.mrb[0].mxu0
            %v1282 = vadd.f32 %v1186, %v1281
            %v1283 = vpop.f32.mrb[0].mxu0
            %1284 = vmatprep.mubr.bf16.mxu0 0
            %1285 = vmatmul.mubr.bf16.gmra.mrb[0].mxu0 %v1159
            %v1286 = vpop.f32.mrb[0].mxu0
            %v1287 = vadd.f32 %v1186, %v1286
            %v1288 = vpop.f32.mrb[0].mxu0
            %v1289 = vpop.f32.mrb[0].mxu0
            %v1290 = vadd.f32 %v1186, %v1289
            %v1291 = vpop.f32.mrb[0].mxu0
            %1292 = vmatprep.mubr.bf16.mxu0 0
            %1293 = vmatmul.mubr.bf16.gmra.mrb[0].mxu0 %v1160
            %v1294 = vpop.f32.mrb[0].mxu0
            %v1295 = vadd.f32 %v1186, %v1294
            %v1296 = vpop.f32.mrb[0].mxu0
            %v1297 = vpop.f32.mrb[0].mxu0
            %v1298 = vadd.f32 %v1186, %v1297
            %v1299 = vpop.f32.mrb[0].mxu0
            %1300 = vmatprep.mubr.bf16.mxu0 0
            %1301 = vmatmul.mubr.bf16.gmra.mrb[0].mxu0 %v1161
            %v1302 = vpop.f32.mrb[0].mxu0
            %v1303 = vadd.f32 %v1186, %v1302
            %v1304 = vpop.f32.mrb[0].mxu0
            %v1305 = vpop.f32.mrb[0].mxu0
            %v1306 = vadd.f32 %v1186, %v1305
            %v1307 = vpop.f32.mrb[0].mxu0
            %1308 = vmatprep.mubr.bf16.mxu0 0
            %1309 = vmatmul.mubr.bf16.gmra.mrb[0].mxu0 %v1162
            %v1310 = vpop.f32.mrb[0].mxu0
            %v1311 = vadd.f32 %v1186, %v1310
            %v1312 = vpop.f32.mrb[0].mxu0
            %v1313 = vpop.f32.mrb[0].mxu0
            %v1314 = vadd.f32 %v1186, %v1313
            %v1315 = vpop.f32.mrb[0].mxu0
            %1316 = vmatprep.mubr.bf16.mxu0 0
            %1317 = vmatmul.mubr.bf16.gmra.mrb[0].mxu0 %v1163
            %v1318 = vpop.f32.mrb[0].mxu0
            %v1319 = vadd.f32 %v1186, %v1318
            %v1320 = vpop.f32.mrb[0].mxu0
            %v1321 = vpop.f32.mrb[0].mxu0
            %v1322 = vadd.f32 %v1186, %v1321
            %v1323 = vpop.f32.mrb[0].mxu0
            %1324 = vmatprep.mubr.bf16.mxu0 0
            %1325 = vmatmul.mubr.bf16.gmra.mrb[0].mxu0 %v1164
            %v1326 = vpop.f32.mrb[0].mxu0
            %v1327 = vadd.f32 %v1186, %v1326
            %v1328 = vpop.f32.mrb[0].mxu0
            %v1329 = vpop.f32.mrb[0].mxu0
            %v1330 = vadd.f32 %v1186, %v1329
            %v1331 = vpop.f32.mrb[0].mxu0
            %1332 = vdwg.mxu0
            %1333 = vst [vmem:[%s403] sm:$0xff] %v1271
            %1334 = vst [vmem:[%s403 + $0x8] sm:$0xff] %v1274
            %1335 = vst [vmem:[%s403 + $0x10] sm:$0xff] %v1279
            %1336 = vst [vmem:[%s403 + $0x18] sm:$0xff] %v1282
            %1337 = vst [vmem:[%s403 + $0x20] sm:$0xff] %v1287
            %1338 = vst [vmem:[%s403 + $0x28] sm:$0xff] %v1290
            %1339 = vst [vmem:[%s403 + $0x30] sm:$0xff] %v1295
            %1340 = vst [vmem:[%s403 + $0x38] sm:$0xff] %v1298
            %1341 = vst [vmem:[%s403 + $0x40] sm:$0xff] %v1303
            %1342 = vst [vmem:[%s403 + $0x48] sm:$0xff] %v1306
            %1343 = vst [vmem:[%s403 + $0x50] sm:$0xff] %v1311
            %1344 = vst [vmem:[%s403 + $0x58] sm:$0xff] %v1314
            %1345 = vst [vmem:[%s403 + $0x60] sm:$0xff] %v1319
            %1346 = vst [vmem:[%s403 + $0x68] sm:$0xff] %v1322
            %1347 = vst [vmem:[%s403 + $0x70] sm:$0xff] %v1327
            %1348 = vst [vmem:[%s403 + $0x78] sm:$0xff] %v1330
          $region105: #{gcn_forward.1} parent=100 // pred_fallthru
            _
        $region101: #{gcn_forward.1} parent=80 // pred_fallthru
          _
        %s1349 = smul.u32 %s22, %s23
        %s1350 = smul.u32 16, %s1349
        %p1351 = scmp.lt.s32.totalorder %s1350, 47
        %s1352 = scalar_select %p1351, %s1350, 47
        %s1353 = smul.addr %s1352, 8
        %s1354 = scalar_lea.vmem %s6, %s1353
        // Predicated region
        $region106: #{gcn_forward.1} parent=80 // pred_check
          %p1355 = pneg %p194
        $region107: #{gcn_forward.1} parent=80 // pred_check_branch
          %1357 = sbr.rel (%p1355) target = $region109
        $region108: #{gcn_forward.1} parent=80 // pred_region
          %s1358 = smul.u32 %s22, %s23
          %s1359 = smul.u32 16, %s1358
        $region109: #{gcn_forward.1} parent=80 // pred_fallthru
          _
      $region81: #{gcn_forward.1} parent=5 // pred_fallthru
        _
      %p1360 = scmp.le.s32.totalorder 2, %s12
      // Predicated region
      $region110: #{gcn_forward.1} parent=5 // pred_check
        %p1361 = pneg %p1360
      $region111: #{gcn_forward.1} parent=5 // pred_check_branch
        %1363 = sbr.rel (%p1361) target = $region113
      $region112: #{gcn_forward.1} parent=5 // pred_region
        %s1364 = ssub.s32 %s12, 2
        // Predicated region
        $region114: #{gcn_forward.1} parent=112 // pred_check
          %p1365 = pneg %p200
        $region115: #{gcn_forward.1} parent=112 // pred_check_branch
          %1367 = sbr.rel (%p1365) target = $region117
        $region116: #{gcn_forward.1} parent=112 // pred_region
          %s1368 = smul.u32 %s25, %s26
          %s1369 = smul.u32 16, %s1368
          %p1370 = scmp.lt.s32.totalorder %s1369, 47
          %s1371 = scalar_select %p1370, %s1369, 47
          %s1372 = smul.addr %s1371, 8
          %s1373 = scalar_lea.vmem %s6, %s1372
        $region117: #{gcn_forward.1} parent=112 // pred_fallthru
          _
      $region113: #{gcn_forward.1} parent=5 // pred_fallthru
        _
    $region6: #{gcn_forward.1} parent=1 // loop_footer
      %s16 = sadd.s32 1, %s12
    $region7: #{gcn_forward.1} parent=1 // loop_footer_branch
      %11 = sbr.rel target = $region3
    $region8: #{gcn_forward.1} parent=1 // loop_exit
      _

</llo_original>
